<compile_context>
chip_gen: v7x
topology: tpu7x:2x2x1
jax: 0.10.0
libtpu: 0.0.40
codegen_flags: <defaults>
</compile_context>

<pallas_src>
import numpy as np
import jax
import jax.numpy as jnp
from jax import lax
from jax.experimental import pallas as pl
from jax.experimental.pallas import tpu as pltpu


# ------------------------------ fused kernel ------------------------------

def make_base_kernel(H, W):
    HW = H * W
    offsets = [(dy, dx) for dy in (-1, 0, 1) for dx in (-1, 0, 1)]

    def kernel(x_ref, w1t_ref, b1_ref, w2_ref, b2_ref, mask_ref,
               wg_ref, wc_ref, o_ref):
        x = x_ref[...]                                   # (C, HW) f32
        C = x.shape[0]
        k = wg_ref.shape[0]                              # = HW // C lane blocks

        def sigmoid(v):
            # pl.reciprocal(..., approx=True) (EUP vrcp) is available here, but
            # exact division keeps a tight tolerance vs the f32 reference; the
            # EUP is no longer the bottleneck once sigmoid is computed only once.
            return 1.0 / (1.0 + jnp.exp(-v))

        # ---------------- SELayer ----------------
        y = jnp.mean(x, axis=1, keepdims=True)                               # (C, 1)
        z = jnp.sum(w1t_ref[...] * y, axis=0, keepdims=True) + b1_ref[...]   # (1, Cr)
        z = jnp.maximum(z, 0.0)
        s = jnp.sum(w2_ref[...] * z, axis=1, keepdims=True) + b2_ref[...]    # (C, 1)
        feat = x * sigmoid(s)                                                # (C, HW)

        # ------------- 3x3 self-patch attention (CSA branch) -------------
        sig = sigmoid(feat)                              # computed ONCE, then rolled
        msk = mask_ref[...]                              # (9, HW): 0 where the 3x3
                                                         # neighbour falls in the pad
        inv_c = 1.0 / C

        def shifted(a, j, dy, dx):
            if dy == 0 and dx == 0:                      # centre tap, mask == 1
                return a
            off = dy * W + dx
            r = pltpu.roll(a, shift=(-off) % HW, axis=1)   # lane-axis shift (XLU)
            return r * msk[j:j + 1, :]                     # kill pad / wrap values

        # per-position scores over the 9 offsets (channel mean of sig * shift(sig))
        scores = [jnp.sum(sig * shifted(sig, j, dy, dx), axis=0, keepdims=True) * inv_c
                  for j, (dy, dx) in enumerate(offsets)]                      # 9 x (1, HW)

        m = scores[0]
        for sc in scores[1:]:
            m = jnp.maximum(m, sc)
        exps = [jnp.exp(sc - m) for sc in scores]
        den = exps[0]
        for e in exps[1:]:
            den = den + e
        inv_den = 1.0 / den                                                   # (1, HW)

        # weighted sum of the (raw) shifted features, regenerated on the fly
        csa = jnp.zeros_like(feat)
        for j, (dy, dx) in enumerate(offsets):
            csa = csa + (exps[j] * inv_den) * shifted(feat, j, dy, dx)        # (C, HW)

        # ------- down 1x1 conv (2C -> C), folded weights, bf16 MXU --------
        # y[:, a*C:(a+1)*C] = wg[a] @ feat^T + wc[a] @ csa^T realises both the
        # gaussian contraction and the torch .view() reinterpretation exactly.
        feat_b = feat.astype(jnp.bfloat16)
        csa_b = csa.astype(jnp.bfloat16)
        nt = (((1,), (1,)), ((), ()))                    # contract the lane dims
        blocks = []
        for a in range(k):
            yg = lax.dot_general(wg_ref[a], feat_b, nt,
                                 preferred_element_type=jnp.float32)          # (C, C)
            yc = lax.dot_general(wc_ref[a], csa_b, nt,
                                 preferred_element_type=jnp.float32)          # (C, C)
            blocks.append(yg + yc)
        yd = jnp.concatenate(blocks, axis=1) if k > 1 else blocks[0]          # (C, HW)

        # ------ InstanceNorm2d(eps=1e-5, affine=False) + LeakyReLU(0.2) ------
        mu = jnp.mean(yd, axis=1, keepdims=True)
        var = jnp.mean((yd - mu) ** 2, axis=1, keepdims=True)
        yn = (yd - mu) * lax.rsqrt(var + 1e-5)
        o_ref[...] = jnp.where(yn >= 0.0, yn, 0.2 * yn)

    return kernel


# --------------------------- host-side preparation ---------------------------

def _conv_index_masks(H, W):
    """(9, H*W) mask: 1 where the 3x3 neighbour (dy, dx) lies inside the image."""
    m = np.zeros((9, H, W), np.float32)
    j = 0
    for dy in (-1, 0, 1):
        for dx in (-1, 0, 1):
            m[j, max(0, -dy):min(H, H - dy), max(0, -dx):min(W, W - dx)] = 1.0
            j += 1
    return jnp.asarray(m.reshape(9, H * W))


def prepare_params(w1, b1, w2, b2, wd, gus_flat, H, W):
    """One-time weight folding (not per-forward work).

    The original module concatenates two (C, HW) maps obtained by torch .view()
    reinterpretation of (HW, C) buffers.  With HW = k*C the reinterpretation
    splits the lanes into k blocks of C, and the 1x1 down conv folds into
    per-block weights (exact algebra):
        wg[a] = wd[:, :C] @ gus[a::k]        (gaussian branch)
        wc[a][:, a::k] = wd[:, C:]           (CSA branch)
    Folded weights are stored in bf16 (MXU operands); everything else stays f32.
    """
    C = w2.shape[0]
    Cr = w1.shape[0]
    HW = H * W
    assert HW % C == 0, "BASE's .view() trick requires H*W to be a multiple of C"
    k = HW // C
    wd_g, wd_c = wd[:, :C], wd[:, C:]
    wg = jnp.stack([wd_g @ gus_flat[a::k, :] for a in range(k)], axis=0)      # (k, C, HW)
    wc = jnp.stack([jnp.zeros((C, HW), jnp.float32).at[:, a::k].set(wd_c)
                    for a in range(k)], axis=0)                               # (k, C, HW)
    return (jnp.asarray(w1).T,                     # (C, Cr)
            jnp.asarray(b1).reshape(1, Cr),        # (1, Cr)
            jnp.asarray(w2),                       # (C, Cr)
            jnp.asarray(b2).reshape(C, 1),         # (C, 1)
            _conv_index_masks(H, W),               # (9, HW)
            wg.astype(jnp.bfloat16),
            wc.astype(jnp.bfloat16))


def base_forward(x, prepared):
    """BASE.forward: x (1, C, H, W) -> (1, C, H, W); one fused pallas_call."""
    w1t, b1, w2, b2, masks, wg, wc = prepared
    b, C, H, W = x.shape
    assert b == 1, "BASE.forward implicitly requires batch size 1"
    HW = H * W
    x2d = x[0].reshape(C, HW)
    out = pl.pallas_call(
        make_base_kernel(H, W),
        out_shape=jax.ShapeDtypeStruct((C, HW), jnp.float32),
        in_specs=[pl.BlockSpec(memory_space=pltpu.MemorySpace.VMEM)] * 8,
        out_specs=pl.BlockSpec(memory_space=pltpu.MemorySpace.VMEM),
        compiler_params=pltpu.CompilerParams(vmem_limit_bytes=48 * 1024 * 1024),
    )(x2d, w1t, b1, w2, b2, masks, wg, wc)
    return out.reshape(1, C, H, W)


# --------------------------- pure-JAX f32 reference ---------------------------

def _sigmoid(v):
    return 1.0 / (1.0 + jnp.exp(-v))


def make_shifts(img):
    """(C, H, W) -> (9, C, H*W); shift k=(dy*3+dx) is zero-padded img[:, i+dy, j+dx]."""
    C, H, W = img.shape
    p = jnp.pad(img, ((0, 0), (1, 1), (1, 1)))
    sh = [p[:, dy:dy + H, dx:dx + W] for dy in range(3) for dx in range(3)]
    return jnp.stack(sh, axis=0).reshape(9, C, H * W)


def gussin(v, H, W):
    """util.gussin(v) generalised to HxW: normalised Gaussian centred at every pixel."""
    xs = np.arange(H, dtype=np.float64)[:, None]
    ys = np.arange(W, dtype=np.float64)[None, :]
    maps = []
    for i in range(H):
        for k in range(W):
            d = -((xs - i) ** 2 + (ys - k) ** 2) / (2.0 * v * v)
            g = np.exp(d) / (2.0 * np.pi * v * v)
            maps.append(g / g.sum())
    return np.stack(maps, axis=0)  # (H*W, H, W)


def base_reference(x, params, gus3):
    """Faithful (unfolded, f32) replica of BASE.forward for verification."""
    w1t, b1, w2, b2, wd = params
    b, C, H, W = x.shape
    w1 = w1t.T
    y = jnp.mean(x, axis=(2, 3), keepdims=True)
    z = jnp.einsum('oc,bcij->boij', w1, y) + b1.reshape(1, -1, 1, 1)
    z = jnp.maximum(z, 0.0)
    s = jnp.einsum('co,boij->bcij', w2, z) + b2.reshape(1, -1, 1, 1)
    out32 = x * _sigmoid(s)

    feat = out32[0]
    gus_out = jnp.einsum('pxy,cxy->pc', gus3, feat).reshape(1, C, H, W)

    sig = _sigmoid(feat)
    sig_sh = make_shifts(sig)          # pad AFTER sigmoid -> zeros in padding
    raw_sh = make_shifts(feat)
    sigf = sig.reshape(C, H * W)
    score = jnp.mean(sigf[None] * sig_sh, axis=1)                     # (9, HW)
    attn = jax.nn.softmax(score, axis=0)
    out_csa = jnp.sum(attn[:, None, :] * raw_sh, axis=0)              # (C, HW)
    out_csa_r = out_csa.T.reshape(1, C, H, W)

    cat2 = jnp.concatenate([gus_out, out_csa_r], axis=1)[0].reshape(2 * C, H * W)
    yd = jnp.dot(wd, cat2)
    mean = jnp.mean(yd, axis=1, keepdims=True)
    var = jnp.mean((yd - mean) ** 2, axis=1, keepdims=True)
    yn = (yd - mean) / jnp.sqrt(var + 1e-5)
    out = jnp.where(yn >= 0.0, yn, 0.2 * yn)
    return out.reshape(1, C, H, W)


# ------------------------------------ main ------------------------------------

if __name__ == "__main__":
    key = jax.random.PRNGKey(0)
    C, H, W = 32, 8, 8               # inner_nc=32 toy; original uses 512 with 32x32 maps
    Cr = C // 16
    k_x, k_w1, k_b1, k_w2, k_b2, k_wd = jax.random.split(key, 6)

    x = jax.random.normal(k_x, (1, C, H, W), jnp.float32)
    w1 = jax.random.normal(k_w1, (Cr, C), jnp.float32) * 0.2    # SE fc1 1x1 conv
    b1 = jax.random.normal(k_b1, (Cr,), jnp.float32) * 0.1
    w2 = jax.random.normal(k_w2, (C, Cr), jnp.float32) * 0.2    # SE fc2 1x1 conv
    b2 = jax.random.normal(k_b2, (C,), jnp.float32) * 0.1
    wd = jax.random.normal(k_wd, (C, 2 * C), jnp.float32) * 0.1  # down 1x1 conv, no bias

    gus3 = jnp.asarray(gussin(1.5, H, W), dtype=jnp.float32)     # (HW, H, W)
    gus_flat = gus3.reshape(H * W, H * W)

    prepared = prepare_params(w1, b1, w2, b2, wd, gus_flat, H, W)
    fwd = jax.jit(base_forward)
    out = jax.block_until_ready(fwd(x, prepared))

    ref_params = (w1.T, b1.reshape(1, Cr), w2, b2.reshape(C, 1), wd)
    ref = jax.block_until_ready(base_reference(x, ref_params, gus3))

    assert out.shape == (1, C, H, W)
    # Tolerance covers the bf16 MXU operands (f32 accumulation) and the folded
    # down-conv weights vs the pure-f32 unfolded reference; typical max error
    # is a few 1e-3 on unit-scale InstanceNorm outputs.
    err = float(np.max(np.abs(np.asarray(out) - np.asarray(ref))))
    assert np.allclose(np.asarray(out), np.asarray(ref), rtol=3e-2, atol=3e-2), err
    print("KERNEL_OK")
</pallas_src>

<mosaic_0001>
module attributes {stable_mosaic.version = 11 : i64} {
  func.func @kernel(%arg0: memref<32x64xf32, #tpu.memory_space<vmem>>, %arg1: memref<32x2xf32, #tpu.memory_space<vmem>>, %arg2: memref<1x2xf32, #tpu.memory_space<vmem>>, %arg3: memref<32x2xf32, #tpu.memory_space<vmem>>, %arg4: memref<32x1xf32, #tpu.memory_space<vmem>>, %arg5: memref<9x64xf32, #tpu.memory_space<vmem>>, %arg6: memref<2x32x64xbf16, #tpu.memory_space<vmem>>, %arg7: memref<2x32x64xbf16, #tpu.memory_space<vmem>>, %arg8: memref<32x64xf32, #tpu.memory_space<vmem>>) attributes {dimension_semantics = [], scalar_prefetch = 0 : i64, scratch_operands = 0 : i64, tpu.core_type = #tpu.core_type<tc>} {
    %c0 = arith.constant 0 : index
    %c0_0 = arith.constant 0 : index
    %0 = vector.load %arg0[%c0, %c0_0] : memref<32x64xf32, #tpu.memory_space<vmem>>, vector<32x64xf32>
    %cst = arith.constant dense<0.000000e+00> : vector<32xf32>
    %1 = vector.multi_reduction <add>, %0, %cst [1] : vector<32x64xf32> to vector<32xf32>
    %2 = vector.shape_cast %1 : vector<32xf32> to vector<32x1xf32>
    %cst_1 = arith.constant 6.400000e+01 : f32
    %3 = vector.broadcast %cst_1 : f32 to vector<32x1xf32>
    %4 = arith.divf %2, %3 : vector<32x1xf32>
    %c0_2 = arith.constant 0 : index
    %c0_3 = arith.constant 0 : index
    %5 = vector.load %arg1[%c0_2, %c0_3] : memref<32x2xf32, #tpu.memory_space<vmem>>, vector<32x2xf32>
    %6 = vector.broadcast %4 : vector<32x1xf32> to vector<32x2xf32>
    %7 = arith.mulf %5, %6 : vector<32x2xf32>
    %cst_4 = arith.constant dense<0.000000e+00> : vector<2xf32>
    %8 = vector.multi_reduction <add>, %7, %cst_4 [0] : vector<32x2xf32> to vector<2xf32>
    %9 = vector.shape_cast %8 : vector<2xf32> to vector<1x2xf32>
    %c0_5 = arith.constant 0 : index
    %c0_6 = arith.constant 0 : index
    %10 = vector.load %arg2[%c0_5, %c0_6] : memref<1x2xf32, #tpu.memory_space<vmem>>, vector<1x2xf32>
    %11 = arith.addf %9, %10 : vector<1x2xf32>
    %cst_7 = arith.constant 0.000000e+00 : f32
    %12 = vector.broadcast %cst_7 : f32 to vector<1x2xf32>
    %13 = arith.maximumf %11, %12 : vector<1x2xf32>
    %c0_8 = arith.constant 0 : index
    %c0_9 = arith.constant 0 : index
    %14 = vector.load %arg3[%c0_8, %c0_9] : memref<32x2xf32, #tpu.memory_space<vmem>>, vector<32x2xf32>
    %15 = vector.broadcast %13 : vector<1x2xf32> to vector<32x2xf32>
    %16 = arith.mulf %14, %15 : vector<32x2xf32>
    %cst_10 = arith.constant dense<0.000000e+00> : vector<32xf32>
    %17 = vector.multi_reduction <add>, %16, %cst_10 [1] : vector<32x2xf32> to vector<32xf32>
    %18 = vector.shape_cast %17 : vector<32xf32> to vector<32x1xf32>
    %c0_11 = arith.constant 0 : index
    %c0_12 = arith.constant 0 : index
    %19 = vector.load %arg4[%c0_11, %c0_12] : memref<32x1xf32, #tpu.memory_space<vmem>>, vector<32x1xf32>
    %20 = arith.addf %18, %19 : vector<32x1xf32>
    %cst_13 = arith.constant 0.000000e+00 : f32
    %21 = vector.broadcast %cst_13 : f32 to vector<32x1xf32>
    %22 = arith.subf %21, %20 : vector<32x1xf32>
    %23 = math.exp %22 : vector<32x1xf32>
    %cst_14 = arith.constant 1.000000e+00 : f32
    %24 = vector.broadcast %cst_14 : f32 to vector<32x1xf32>
    %25 = arith.addf %24, %23 : vector<32x1xf32>
    %cst_15 = arith.constant 1.000000e+00 : f32
    %26 = vector.broadcast %cst_15 : f32 to vector<32x1xf32>
    %27 = arith.divf %26, %25 : vector<32x1xf32>
    %28 = vector.broadcast %27 : vector<32x1xf32> to vector<32x64xf32>
    %29 = arith.mulf %0, %28 : vector<32x64xf32>
    %cst_16 = arith.constant 0.000000e+00 : f32
    %30 = vector.broadcast %cst_16 : f32 to vector<32x64xf32>
    %31 = arith.subf %30, %29 : vector<32x64xf32>
    %32 = math.exp %31 : vector<32x64xf32>
    %cst_17 = arith.constant 1.000000e+00 : f32
    %33 = vector.broadcast %cst_17 : f32 to vector<32x64xf32>
    %34 = arith.addf %33, %32 : vector<32x64xf32>
    %cst_18 = arith.constant 1.000000e+00 : f32
    %35 = vector.broadcast %cst_18 : f32 to vector<32x64xf32>
    %36 = arith.divf %35, %34 : vector<32x64xf32>
    %c0_19 = arith.constant 0 : index
    %c0_20 = arith.constant 0 : index
    %37 = vector.load %arg5[%c0_19, %c0_20] : memref<9x64xf32, #tpu.memory_space<vmem>>, vector<9x64xf32>
    %c9_i32 = arith.constant 9 : i32
    %38 = tpu.dynamic_rotate %36 by %c9_i32 dim 1 : vector<32x64xf32>, i32 -> vector<32x64xf32>
    %39 = vector.extract_strided_slice %37 {offsets = [0, 0], sizes = [1, 64], strides = [1, 1]} : vector<9x64xf32> to vector<1x64xf32>
    %40 = vector.broadcast %39 : vector<1x64xf32> to vector<32x64xf32>
    %41 = arith.mulf %38, %40 : vector<32x64xf32>
    %42 = arith.mulf %36, %41 : vector<32x64xf32>
    %cst_21 = arith.constant dense<0.000000e+00> : vector<64xf32>
    %43 = vector.multi_reduction <add>, %42, %cst_21 [0] : vector<32x64xf32> to vector<64xf32>
    %44 = vector.shape_cast %43 : vector<64xf32> to vector<1x64xf32>
    %cst_22 = arith.constant 3.125000e-02 : f32
    %45 = vector.broadcast %cst_22 : f32 to vector<1x64xf32>
    %46 = arith.mulf %44, %45 : vector<1x64xf32>
    %c8_i32 = arith.constant 8 : i32
    %47 = tpu.dynamic_rotate %36 by %c8_i32 dim 1 : vector<32x64xf32>, i32 -> vector<32x64xf32>
    %48 = vector.extract_strided_slice %37 {offsets = [1, 0], sizes = [1, 64], strides = [1, 1]} : vector<9x64xf32> to vector<1x64xf32>
    %49 = vector.broadcast %48 : vector<1x64xf32> to vector<32x64xf32>
    %50 = arith.mulf %47, %49 : vector<32x64xf32>
    %51 = arith.mulf %36, %50 : vector<32x64xf32>
    %cst_23 = arith.constant dense<0.000000e+00> : vector<64xf32>
    %52 = vector.multi_reduction <add>, %51, %cst_23 [0] : vector<32x64xf32> to vector<64xf32>
    %53 = vector.shape_cast %52 : vector<64xf32> to vector<1x64xf32>
    %cst_24 = arith.constant 3.125000e-02 : f32
    %54 = vector.broadcast %cst_24 : f32 to vector<1x64xf32>
    %55 = arith.mulf %53, %54 : vector<1x64xf32>
    %c7_i32 = arith.constant 7 : i32
    %56 = tpu.dynamic_rotate %36 by %c7_i32 dim 1 : vector<32x64xf32>, i32 -> vector<32x64xf32>
    %57 = vector.extract_strided_slice %37 {offsets = [2, 0], sizes = [1, 64], strides = [1, 1]} : vector<9x64xf32> to vector<1x64xf32>
    %58 = vector.broadcast %57 : vector<1x64xf32> to vector<32x64xf32>
    %59 = arith.mulf %56, %58 : vector<32x64xf32>
    %60 = arith.mulf %36, %59 : vector<32x64xf32>
    %cst_25 = arith.constant dense<0.000000e+00> : vector<64xf32>
    %61 = vector.multi_reduction <add>, %60, %cst_25 [0] : vector<32x64xf32> to vector<64xf32>
    %62 = vector.shape_cast %61 : vector<64xf32> to vector<1x64xf32>
    %cst_26 = arith.constant 3.125000e-02 : f32
    %63 = vector.broadcast %cst_26 : f32 to vector<1x64xf32>
    %64 = arith.mulf %62, %63 : vector<1x64xf32>
    %c1_i32 = arith.constant 1 : i32
    %65 = tpu.dynamic_rotate %36 by %c1_i32 dim 1 : vector<32x64xf32>, i32 -> vector<32x64xf32>
    %66 = vector.extract_strided_slice %37 {offsets = [3, 0], sizes = [1, 64], strides = [1, 1]} : vector<9x64xf32> to vector<1x64xf32>
    %67 = vector.broadcast %66 : vector<1x64xf32> to vector<32x64xf32>
    %68 = arith.mulf %65, %67 : vector<32x64xf32>
    %69 = arith.mulf %36, %68 : vector<32x64xf32>
    %cst_27 = arith.constant dense<0.000000e+00> : vector<64xf32>
    %70 = vector.multi_reduction <add>, %69, %cst_27 [0] : vector<32x64xf32> to vector<64xf32>
    %71 = vector.shape_cast %70 : vector<64xf32> to vector<1x64xf32>
    %cst_28 = arith.constant 3.125000e-02 : f32
    %72 = vector.broadcast %cst_28 : f32 to vector<1x64xf32>
    %73 = arith.mulf %71, %72 : vector<1x64xf32>
    %74 = arith.mulf %36, %36 : vector<32x64xf32>
    %cst_29 = arith.constant dense<0.000000e+00> : vector<64xf32>
    %75 = vector.multi_reduction <add>, %74, %cst_29 [0] : vector<32x64xf32> to vector<64xf32>
    %76 = vector.shape_cast %75 : vector<64xf32> to vector<1x64xf32>
    %cst_30 = arith.constant 3.125000e-02 : f32
    %77 = vector.broadcast %cst_30 : f32 to vector<1x64xf32>
    %78 = arith.mulf %76, %77 : vector<1x64xf32>
    %c63_i32 = arith.constant 63 : i32
    %79 = tpu.dynamic_rotate %36 by %c63_i32 dim 1 : vector<32x64xf32>, i32 -> vector<32x64xf32>
    %80 = vector.extract_strided_slice %37 {offsets = [5, 0], sizes = [1, 64], strides = [1, 1]} : vector<9x64xf32> to vector<1x64xf32>
    %81 = vector.broadcast %80 : vector<1x64xf32> to vector<32x64xf32>
    %82 = arith.mulf %79, %81 : vector<32x64xf32>
    %83 = arith.mulf %36, %82 : vector<32x64xf32>
    %cst_31 = arith.constant dense<0.000000e+00> : vector<64xf32>
    %84 = vector.multi_reduction <add>, %83, %cst_31 [0] : vector<32x64xf32> to vector<64xf32>
    %85 = vector.shape_cast %84 : vector<64xf32> to vector<1x64xf32>
    %cst_32 = arith.constant 3.125000e-02 : f32
    %86 = vector.broadcast %cst_32 : f32 to vector<1x64xf32>
    %87 = arith.mulf %85, %86 : vector<1x64xf32>
    %c57_i32 = arith.constant 57 : i32
    %88 = tpu.dynamic_rotate %36 by %c57_i32 dim 1 : vector<32x64xf32>, i32 -> vector<32x64xf32>
    %89 = vector.extract_strided_slice %37 {offsets = [6, 0], sizes = [1, 64], strides = [1, 1]} : vector<9x64xf32> to vector<1x64xf32>
    %90 = vector.broadcast %89 : vector<1x64xf32> to vector<32x64xf32>
    %91 = arith.mulf %88, %90 : vector<32x64xf32>
    %92 = arith.mulf %36, %91 : vector<32x64xf32>
    %cst_33 = arith.constant dense<0.000000e+00> : vector<64xf32>
    %93 = vector.multi_reduction <add>, %92, %cst_33 [0] : vector<32x64xf32> to vector<64xf32>
    %94 = vector.shape_cast %93 : vector<64xf32> to vector<1x64xf32>
    %cst_34 = arith.constant 3.125000e-02 : f32
    %95 = vector.broadcast %cst_34 : f32 to vector<1x64xf32>
    %96 = arith.mulf %94, %95 : vector<1x64xf32>
    %c56_i32 = arith.constant 56 : i32
    %97 = tpu.dynamic_rotate %36 by %c56_i32 dim 1 : vector<32x64xf32>, i32 -> vector<32x64xf32>
    %98 = vector.extract_strided_slice %37 {offsets = [7, 0], sizes = [1, 64], strides = [1, 1]} : vector<9x64xf32> to vector<1x64xf32>
    %99 = vector.broadcast %98 : vector<1x64xf32> to vector<32x64xf32>
    %100 = arith.mulf %97, %99 : vector<32x64xf32>
    %101 = arith.mulf %36, %100 : vector<32x64xf32>
    %cst_35 = arith.constant dense<0.000000e+00> : vector<64xf32>
    %102 = vector.multi_reduction <add>, %101, %cst_35 [0] : vector<32x64xf32> to vector<64xf32>
    %103 = vector.shape_cast %102 : vector<64xf32> to vector<1x64xf32>
    %cst_36 = arith.constant 3.125000e-02 : f32
    %104 = vector.broadcast %cst_36 : f32 to vector<1x64xf32>
    %105 = arith.mulf %103, %104 : vector<1x64xf32>
    %c55_i32 = arith.constant 55 : i32
    %106 = tpu.dynamic_rotate %36 by %c55_i32 dim 1 : vector<32x64xf32>, i32 -> vector<32x64xf32>
    %107 = vector.extract_strided_slice %37 {offsets = [8, 0], sizes = [1, 64], strides = [1, 1]} : vector<9x64xf32> to vector<1x64xf32>
    %108 = vector.broadcast %107 : vector<1x64xf32> to vector<32x64xf32>
    %109 = arith.mulf %106, %108 : vector<32x64xf32>
    %110 = arith.mulf %36, %109 : vector<32x64xf32>
    %cst_37 = arith.constant dense<0.000000e+00> : vector<64xf32>
    %111 = vector.multi_reduction <add>, %110, %cst_37 [0] : vector<32x64xf32> to vector<64xf32>
    %112 = vector.shape_cast %111 : vector<64xf32> to vector<1x64xf32>
    %cst_38 = arith.constant 3.125000e-02 : f32
    %113 = vector.broadcast %cst_38 : f32 to vector<1x64xf32>
    %114 = arith.mulf %112, %113 : vector<1x64xf32>
    %115 = arith.maximumf %46, %55 : vector<1x64xf32>
    %116 = arith.maximumf %115, %64 : vector<1x64xf32>
    %117 = arith.maximumf %116, %73 : vector<1x64xf32>
    %118 = arith.maximumf %117, %78 : vector<1x64xf32>
    %119 = arith.maximumf %118, %87 : vector<1x64xf32>
    %120 = arith.maximumf %119, %96 : vector<1x64xf32>
    %121 = arith.maximumf %120, %105 : vector<1x64xf32>
    %122 = arith.maximumf %121, %114 : vector<1x64xf32>
    %123 = arith.subf %46, %122 : vector<1x64xf32>
    %124 = math.exp %123 : vector<1x64xf32>
    %125 = arith.subf %55, %122 : vector<1x64xf32>
    %126 = math.exp %125 : vector<1x64xf32>
    %127 = arith.subf %64, %122 : vector<1x64xf32>
    %128 = math.exp %127 : vector<1x64xf32>
    %129 = arith.subf %73, %122 : vector<1x64xf32>
    %130 = math.exp %129 : vector<1x64xf32>
    %131 = arith.subf %78, %122 : vector<1x64xf32>
    %132 = math.exp %131 : vector<1x64xf32>
    %133 = arith.subf %87, %122 : vector<1x64xf32>
    %134 = math.exp %133 : vector<1x64xf32>
    %135 = arith.subf %96, %122 : vector<1x64xf32>
    %136 = math.exp %135 : vector<1x64xf32>
    %137 = arith.subf %105, %122 : vector<1x64xf32>
    %138 = math.exp %137 : vector<1x64xf32>
    %139 = arith.subf %114, %122 : vector<1x64xf32>
    %140 = math.exp %139 : vector<1x64xf32>
    %141 = arith.addf %124, %126 : vector<1x64xf32>
    %142 = arith.addf %141, %128 : vector<1x64xf32>
    %143 = arith.addf %142, %130 : vector<1x64xf32>
    %144 = arith.addf %143, %132 : vector<1x64xf32>
    %145 = arith.addf %144, %134 : vector<1x64xf32>
    %146 = arith.addf %145, %136 : vector<1x64xf32>
    %147 = arith.addf %146, %138 : vector<1x64xf32>
    %148 = arith.addf %147, %140 : vector<1x64xf32>
    %cst_39 = arith.constant 1.000000e+00 : f32
    %149 = vector.broadcast %cst_39 : f32 to vector<1x64xf32>
    %150 = arith.divf %149, %148 : vector<1x64xf32>
    %cst_40 = arith.constant 0.000000e+00 : f32
    %151 = vector.broadcast %cst_40 : f32 to vector<32x64xf32>
    %152 = arith.mulf %124, %150 : vector<1x64xf32>
    %c9_i32_41 = arith.constant 9 : i32
    %153 = tpu.dynamic_rotate %29 by %c9_i32_41 dim 1 : vector<32x64xf32>, i32 -> vector<32x64xf32>
    %154 = vector.extract_strided_slice %37 {offsets = [0, 0], sizes = [1, 64], strides = [1, 1]} : vector<9x64xf32> to vector<1x64xf32>
    %155 = vector.broadcast %154 : vector<1x64xf32> to vector<32x64xf32>
    %156 = arith.mulf %153, %155 : vector<32x64xf32>
    %157 = vector.broadcast %152 : vector<1x64xf32> to vector<32x64xf32>
    %158 = arith.mulf %157, %156 : vector<32x64xf32>
    %159 = arith.addf %151, %158 : vector<32x64xf32>
    %160 = arith.mulf %126, %150 : vector<1x64xf32>
    %c8_i32_42 = arith.constant 8 : i32
    %161 = tpu.dynamic_rotate %29 by %c8_i32_42 dim 1 : vector<32x64xf32>, i32 -> vector<32x64xf32>
    %162 = vector.extract_strided_slice %37 {offsets = [1, 0], sizes = [1, 64], strides = [1, 1]} : vector<9x64xf32> to vector<1x64xf32>
    %163 = vector.broadcast %162 : vector<1x64xf32> to vector<32x64xf32>
    %164 = arith.mulf %161, %163 : vector<32x64xf32>
    %165 = vector.broadcast %160 : vector<1x64xf32> to vector<32x64xf32>
    %166 = arith.mulf %165, %164 : vector<32x64xf32>
    %167 = arith.addf %159, %166 : vector<32x64xf32>
    %168 = arith.mulf %128, %150 : vector<1x64xf32>
    %c7_i32_43 = arith.constant 7 : i32
    %169 = tpu.dynamic_rotate %29 by %c7_i32_43 dim 1 : vector<32x64xf32>, i32 -> vector<32x64xf32>
    %170 = vector.extract_strided_slice %37 {offsets = [2, 0], sizes = [1, 64], strides = [1, 1]} : vector<9x64xf32> to vector<1x64xf32>
    %171 = vector.broadcast %170 : vector<1x64xf32> to vector<32x64xf32>
    %172 = arith.mulf %169, %171 : vector<32x64xf32>
    %173 = vector.broadcast %168 : vector<1x64xf32> to vector<32x64xf32>
    %174 = arith.mulf %173, %172 : vector<32x64xf32>
    %175 = arith.addf %167, %174 : vector<32x64xf32>
    %176 = arith.mulf %130, %150 : vector<1x64xf32>
    %c1_i32_44 = arith.constant 1 : i32
    %177 = tpu.dynamic_rotate %29 by %c1_i32_44 dim 1 : vector<32x64xf32>, i32 -> vector<32x64xf32>
    %178 = vector.extract_strided_slice %37 {offsets = [3, 0], sizes = [1, 64], strides = [1, 1]} : vector<9x64xf32> to vector<1x64xf32>
    %179 = vector.broadcast %178 : vector<1x64xf32> to vector<32x64xf32>
    %180 = arith.mulf %177, %179 : vector<32x64xf32>
    %181 = vector.broadcast %176 : vector<1x64xf32> to vector<32x64xf32>
    %182 = arith.mulf %181, %180 : vector<32x64xf32>
    %183 = arith.addf %175, %182 : vector<32x64xf32>
    %184 = arith.mulf %132, %150 : vector<1x64xf32>
    %185 = vector.broadcast %184 : vector<1x64xf32> to vector<32x64xf32>
    %186 = arith.mulf %185, %29 : vector<32x64xf32>
    %187 = arith.addf %183, %186 : vector<32x64xf32>
    %188 = arith.mulf %134, %150 : vector<1x64xf32>
    %c63_i32_45 = arith.constant 63 : i32
    %189 = tpu.dynamic_rotate %29 by %c63_i32_45 dim 1 : vector<32x64xf32>, i32 -> vector<32x64xf32>
    %190 = vector.extract_strided_slice %37 {offsets = [5, 0], sizes = [1, 64], strides = [1, 1]} : vector<9x64xf32> to vector<1x64xf32>
    %191 = vector.broadcast %190 : vector<1x64xf32> to vector<32x64xf32>
    %192 = arith.mulf %189, %191 : vector<32x64xf32>
    %193 = vector.broadcast %188 : vector<1x64xf32> to vector<32x64xf32>
    %194 = arith.mulf %193, %192 : vector<32x64xf32>
    %195 = arith.addf %187, %194 : vector<32x64xf32>
    %196 = arith.mulf %136, %150 : vector<1x64xf32>
    %c57_i32_46 = arith.constant 57 : i32
    %197 = tpu.dynamic_rotate %29 by %c57_i32_46 dim 1 : vector<32x64xf32>, i32 -> vector<32x64xf32>
    %198 = vector.extract_strided_slice %37 {offsets = [6, 0], sizes = [1, 64], strides = [1, 1]} : vector<9x64xf32> to vector<1x64xf32>
    %199 = vector.broadcast %198 : vector<1x64xf32> to vector<32x64xf32>
    %200 = arith.mulf %197, %199 : vector<32x64xf32>
    %201 = vector.broadcast %196 : vector<1x64xf32> to vector<32x64xf32>
    %202 = arith.mulf %201, %200 : vector<32x64xf32>
    %203 = arith.addf %195, %202 : vector<32x64xf32>
    %204 = arith.mulf %138, %150 : vector<1x64xf32>
    %c56_i32_47 = arith.constant 56 : i32
    %205 = tpu.dynamic_rotate %29 by %c56_i32_47 dim 1 : vector<32x64xf32>, i32 -> vector<32x64xf32>
    %206 = vector.extract_strided_slice %37 {offsets = [7, 0], sizes = [1, 64], strides = [1, 1]} : vector<9x64xf32> to vector<1x64xf32>
    %207 = vector.broadcast %206 : vector<1x64xf32> to vector<32x64xf32>
    %208 = arith.mulf %205, %207 : vector<32x64xf32>
    %209 = vector.broadcast %204 : vector<1x64xf32> to vector<32x64xf32>
    %210 = arith.mulf %209, %208 : vector<32x64xf32>
    %211 = arith.addf %203, %210 : vector<32x64xf32>
    %212 = arith.mulf %140, %150 : vector<1x64xf32>
    %c55_i32_48 = arith.constant 55 : i32
    %213 = tpu.dynamic_rotate %29 by %c55_i32_48 dim 1 : vector<32x64xf32>, i32 -> vector<32x64xf32>
    %214 = vector.extract_strided_slice %37 {offsets = [8, 0], sizes = [1, 64], strides = [1, 1]} : vector<9x64xf32> to vector<1x64xf32>
    %215 = vector.broadcast %214 : vector<1x64xf32> to vector<32x64xf32>
    %216 = arith.mulf %213, %215 : vector<32x64xf32>
    %217 = vector.broadcast %212 : vector<1x64xf32> to vector<32x64xf32>
    %218 = arith.mulf %217, %216 : vector<32x64xf32>
    %219 = arith.addf %211, %218 : vector<32x64xf32>
    %220 = arith.truncf %29 : vector<32x64xf32> to vector<32x64xbf16>
    %221 = arith.truncf %219 : vector<32x64xf32> to vector<32x64xbf16>
    %c0_49 = arith.constant 0 : index
    %c0_50 = arith.constant 0 : index
    %c0_51 = arith.constant 0 : index
    %222 = vector.load %arg6[%c0_49, %c0_50, %c0_51] : memref<2x32x64xbf16, #tpu.memory_space<vmem>>, vector<1x32x64xbf16>
    %223 = vector.shape_cast %222 : vector<1x32x64xbf16> to vector<32x64xbf16>
    %cst_52 = arith.constant dense<0.000000e+00> : vector<32x32xf32>
    %224 = tpu.matmul %223, %220, %cst_52 {dimension_numbers = #tpu.dot_dimension_numbers<[1], [1], [0], [0], [0, 0, 1, 0], [], []>} : vector<32x64xbf16>, vector<32x64xbf16>, vector<32x32xf32> -> vector<32x32xf32>
    %c0_53 = arith.constant 0 : index
    %c0_54 = arith.constant 0 : index
    %c0_55 = arith.constant 0 : index
    %225 = vector.load %arg7[%c0_53, %c0_54, %c0_55] : memref<2x32x64xbf16, #tpu.memory_space<vmem>>, vector<1x32x64xbf16>
    %226 = vector.shape_cast %225 : vector<1x32x64xbf16> to vector<32x64xbf16>
    %cst_56 = arith.constant dense<0.000000e+00> : vector<32x32xf32>
    %227 = tpu.matmul %226, %221, %cst_56 {dimension_numbers = #tpu.dot_dimension_numbers<[1], [1], [0], [0], [0, 0, 1, 0], [], []>} : vector<32x64xbf16>, vector<32x64xbf16>, vector<32x32xf32> -> vector<32x32xf32>
    %228 = arith.addf %224, %227 : vector<32x32xf32>
    %c1 = arith.constant 1 : index
    %c0_57 = arith.constant 0 : index
    %c0_58 = arith.constant 0 : index
    %229 = vector.load %arg6[%c1, %c0_57, %c0_58] : memref<2x32x64xbf16, #tpu.memory_space<vmem>>, vector<1x32x64xbf16>
    %230 = vector.shape_cast %229 : vector<1x32x64xbf16> to vector<32x64xbf16>
    %cst_59 = arith.constant dense<0.000000e+00> : vector<32x32xf32>
    %231 = tpu.matmul %230, %220, %cst_59 {dimension_numbers = #tpu.dot_dimension_numbers<[1], [1], [0], [0], [0, 0, 1, 0], [], []>} : vector<32x64xbf16>, vector<32x64xbf16>, vector<32x32xf32> -> vector<32x32xf32>
    %c1_60 = arith.constant 1 : index
    %c0_61 = arith.constant 0 : index
    %c0_62 = arith.constant 0 : index
    %232 = vector.load %arg7[%c1_60, %c0_61, %c0_62] : memref<2x32x64xbf16, #tpu.memory_space<vmem>>, vector<1x32x64xbf16>
    %233 = vector.shape_cast %232 : vector<1x32x64xbf16> to vector<32x64xbf16>
    %cst_63 = arith.constant dense<0.000000e+00> : vector<32x32xf32>
    %234 = tpu.matmul %233, %221, %cst_63 {dimension_numbers = #tpu.dot_dimension_numbers<[1], [1], [0], [0], [0, 0, 1, 0], [], []>} : vector<32x64xbf16>, vector<32x64xbf16>, vector<32x32xf32> -> vector<32x32xf32>
    %235 = arith.addf %231, %234 : vector<32x32xf32>
    %236 = tpu.concatenate %228, %235 in 1 : vector<32x32xf32>, vector<32x32xf32> -> vector<32x64xf32>
    %cst_64 = arith.constant dense<0.000000e+00> : vector<32xf32>
    %237 = vector.multi_reduction <add>, %236, %cst_64 [1] : vector<32x64xf32> to vector<32xf32>
    %238 = vector.shape_cast %237 : vector<32xf32> to vector<32x1xf32>
    %cst_65 = arith.constant 6.400000e+01 : f32
    %239 = vector.broadcast %cst_65 : f32 to vector<32x1xf32>
    %240 = arith.divf %238, %239 : vector<32x1xf32>
    %241 = vector.broadcast %240 : vector<32x1xf32> to vector<32x64xf32>
    %242 = arith.subf %236, %241 : vector<32x64xf32>
    %243 = arith.mulf %242, %242 : vector<32x64xf32>
    %cst_66 = arith.constant dense<0.000000e+00> : vector<32xf32>
    %244 = vector.multi_reduction <add>, %243, %cst_66 [1] : vector<32x64xf32> to vector<32xf32>
    %245 = vector.shape_cast %244 : vector<32xf32> to vector<32x1xf32>
    %cst_67 = arith.constant 6.400000e+01 : f32
    %246 = vector.broadcast %cst_67 : f32 to vector<32x1xf32>
    %247 = arith.divf %245, %246 : vector<32x1xf32>
    %248 = vector.broadcast %240 : vector<32x1xf32> to vector<32x64xf32>
    %249 = arith.subf %236, %248 : vector<32x64xf32>
    %cst_68 = arith.constant 9.99999974E-6 : f32
    %250 = vector.broadcast %cst_68 : f32 to vector<32x1xf32>
    %251 = arith.addf %247, %250 : vector<32x1xf32>
    %252 = math.rsqrt %251 : vector<32x1xf32>
    %253 = vector.broadcast %252 : vector<32x1xf32> to vector<32x64xf32>
    %254 = arith.mulf %249, %253 : vector<32x64xf32>
    %cst_69 = arith.constant 0.000000e+00 : f32
    %255 = vector.broadcast %cst_69 : f32 to vector<32x64xf32>
    %256 = arith.cmpf oge, %254, %255 : vector<32x64xf32>
    %cst_70 = arith.constant 2.000000e-01 : f32
    %257 = vector.broadcast %cst_70 : f32 to vector<32x64xf32>
    %258 = arith.mulf %257, %254 : vector<32x64xf32>
    %259 = arith.select %256, %254, %258 : vector<32x64xi1>, vector<32x64xf32>
    %c0_71 = arith.constant 0 : index
    %c0_72 = arith.constant 0 : index
    %260 = vector.load %arg8[%c0_71, %c0_72] : memref<32x64xf32, #tpu.memory_space<vmem>>, vector<32x64xf32>
    tpu.vector_store %arg8[%c0_71, %c0_72], %259 {strides = array<i32>} : memref<32x64xf32, #tpu.memory_space<vmem>>, vector<32x64xf32>,
    return
  }
}

</mosaic_0001>

<llo_original>
// kernel: base_forward.1
$region0: #{base_forward.1}
  #allocation0 [shape = 'u32[]', space=smem, size = 0x4, offset = 0x4, fixed_abs, tag = 'smem constant byte address 0x4 - core index']
  #allocation1 [shape = 'u32[144,128]{1,0:T(1,128)}', space=vmem, size = 0x12000, scoped, tag = 'internal scratch']
  %s0 = inlined_call_operand.vmem [shape: f32[32,64], index: 0, kind: input, shape index: {}]
  %s1 = inlined_call_operand.vmem [shape: f32[32,2], index: 1, kind: input, shape index: {}]
  %s2 = inlined_call_operand.vmem [shape: f32[1,2], index: 2, kind: input, shape index: {}]
  %s3 = inlined_call_operand.vmem [shape: f32[32,2], index: 3, kind: input, shape index: {}]
  %s4 = inlined_call_operand.vmem [shape: f32[32,1], index: 4, kind: input, shape index: {}]
  %s5 = inlined_call_operand.vmem [shape: f32[9,64], index: 5, kind: input, shape index: {}]
  %s6 = inlined_call_operand.vmem [shape: bf16[2,32,64], index: 6, kind: input, shape index: {}]
  %s7 = inlined_call_operand.vmem [shape: bf16[2,32,64], index: 7, kind: input, shape index: {}]
  %s8 = inlined_call_operand.vmem [shape: f32[32,64], index: 8, kind: output, shape index: {}]
  %s9 = sld [smem:[#allocation0]]
  $region42: #{base_forward.1} parent=0
    _
  %s11 = ssub.s32 1, %s9
  %s12 = scalar_select 0, %s11, %s9
  // Predicated region
  $region2: #{base_forward.1} parent=0 // pred_check
    _
  $region3: #{base_forward.1} parent=0 // pred_check_branch
    %14 = sbr.rel (0) target = $region5
  $region4: #{base_forward.1} parent=0 // pred_region
    _
  $region5: #{base_forward.1} parent=0 // pred_fallthru
    _
  // Predicated region
  $region6: #{base_forward.1} parent=0 // pred_check
    _
  $region7: #{base_forward.1} parent=0 // pred_check_branch
    %16 = sbr.rel (0) target = $region9
  $region8: #{base_forward.1} parent=0 // pred_region
    _
  $region9: #{base_forward.1} parent=0 // pred_fallthru
    _
  // Predicated region
  $region10: #{base_forward.1} parent=0 // pred_check
    _
  $region11: #{base_forward.1} parent=0 // pred_check_branch
    %18 = sbr.rel (0) target = $region13
  $region12: #{base_forward.1} parent=0 // pred_region
    _
  $region13: #{base_forward.1} parent=0 // pred_fallthru
    _
  // Predicated region
  $region14: #{base_forward.1} parent=0 // pred_check
    _
  $region15: #{base_forward.1} parent=0 // pred_check_branch
    %20 = sbr.rel (0) target = $region17
  $region16: #{base_forward.1} parent=0 // pred_region
    _
  $region17: #{base_forward.1} parent=0 // pred_fallthru
    _
  // Predicated region
  $region18: #{base_forward.1} parent=0 // pred_check
    _
  $region19: #{base_forward.1} parent=0 // pred_check_branch
    %22 = sbr.rel (0) target = $region21
  $region20: #{base_forward.1} parent=0 // pred_region
    _
  $region21: #{base_forward.1} parent=0 // pred_fallthru
    _
  // Predicated region
  $region22: #{base_forward.1} parent=0 // pred_check
    _
  $region23: #{base_forward.1} parent=0 // pred_check_branch
    %24 = sbr.rel (0) target = $region25
  $region24: #{base_forward.1} parent=0 // pred_region
    _
  $region25: #{base_forward.1} parent=0 // pred_fallthru
    _
  // Predicated region
  $region26: #{base_forward.1} parent=0 // pred_check
    _
  $region27: #{base_forward.1} parent=0 // pred_check_branch
    %26 = sbr.rel (0) target = $region29
  $region28: #{base_forward.1} parent=0 // pred_region
    _
  $region29: #{base_forward.1} parent=0 // pred_fallthru
    _
  // Predicated region
  $region30: #{base_forward.1} parent=0 // pred_check
    _
  $region31: #{base_forward.1} parent=0 // pred_check_branch
    %28 = sbr.rel (0) target = $region33
  $region32: #{base_forward.1} parent=0 // pred_region
    _
  $region33: #{base_forward.1} parent=0 // pred_fallthru
    _
  %v30 = vld [vmem:[%s0] sm:$0xff]
  %v31 = vld [vmem:[%s0 + $0x8] sm:$0xff]
  %v32 = vld [vmem:[%s0 + $0x10] sm:$0xff]
  %v33 = vld [vmem:[%s0 + $0x18] sm:$0xff]
  %vm34 = vcmask 523264
  %v35 = vsel %vm34, %v30, 0.0
  %36 = vadd.xlane.f32.xlu0 %v35
  %v37 = vpop.xlane.xlu0 %36
  %v38 = vsel %vm34, %v31, 0.0
  %39 = vadd.xlane.f32.xlu0 %v38
  %v40 = vpop.xlane.xlu0 %39
  %v41 = vsel %vm34, %v32, 0.0
  %42 = vadd.xlane.f32.xlu0 %v41
  %v43 = vpop.xlane.xlu0 %42
  %v44 = vsel %vm34, %v33, 0.0
  %45 = vadd.xlane.f32.xlu0 %v44
  %v46 = vpop.xlane.xlu0 %45
  %v47 = vrcp.pop 64.0
  %v48 = vmul.f32 %v37, %v47
  %v49 = vmul.f32 %v40, %v47
  %v50 = vmul.f32 %v43, %v47
  %v51 = vmul.f32 %v46, %v47
  %v52 = vld [vmem:[%s1] sm:$0xff]
  %v53 = vld [vmem:[%s1 + $0x8] sm:$0xff]
  %v54 = vld [vmem:[%s1 + $0x10] sm:$0xff]
  %v55 = vld [vmem:[%s1 + $0x18] sm:$0xff]
  %v56 = vmul.f32 %v52, %v48
  %v57 = vmul.f32 %v53, %v49
  %v58 = vmul.f32 %v54, %v50
  %v59 = vmul.f32 %v55, %v51
  %vm60 = vcmask 15360
  %v61 = vsel %vm60, %v56, 0.0
  %v62 = vsel %vm60, %v57, 0.0
  %v63 = vadd.f32 %v61, %v62
  %v64 = vsel %vm60, %v58, 0.0
  %v65 = vadd.f32 %v63, %v64
  %v66 = vsel %vm60, %v59, 0.0
  %v67 = vadd.f32 %v65, %v66
  %v68 = vrot.slane %v67, 4
  %v69 = vadd.f32 %v67, %v68
  %v70 = vrot.slane %v69, 2
  %v71 = vadd.f32 %v69, %v70
  %v72 = vrot.slane %v71, 1
  %v73 = vadd.f32 %v71, %v72
  %v74 = vld [vmem:[%s2] sm:$0x1]
  %v75 = vadd.f32 %v73, %v74
  %v76 = vmax.f32 %v75, 0.0
  %v77 = vld [vmem:[%s3] sm:$0xff]
  %v78 = vld [vmem:[%s3 + $0x8] sm:$0xff]
  %v79 = vld [vmem:[%s3 + $0x10] sm:$0xff]
  %v80 = vld [vmem:[%s3 + $0x18] sm:$0xff]
  %v81 = vlaneseq
  %v82 = vshrl.u32 %v81, 7
  %v83 = vsub.s32 0, %v82
  %v84 = vrot.slane %v76, %v83
  %v85 = vmul.f32 %v77, %v84
  %v86 = vmul.f32 %v78, %v84
  %v87 = vmul.f32 %v79, %v84
  %v88 = vmul.f32 %v80, %v84
  %v89 = vsel %vm60, %v85, 0.0
  %90 = vadd.xlane.f32.xlu0 %v89
  %v91 = vpop.xlane.xlu0 %90
  %v92 = vsel %vm60, %v86, 0.0
  %93 = vadd.xlane.f32.xlu0 %v92
  %v94 = vpop.xlane.xlu0 %93
  %v95 = vsel %vm60, %v87, 0.0
  %96 = vadd.xlane.f32.xlu0 %v95
  %v97 = vpop.xlane.xlu0 %96
  %v98 = vsel %vm60, %v88, 0.0
  %99 = vadd.xlane.f32.xlu0 %v98
  %v100 = vpop.xlane.xlu0 %99
  %v101 = vld [vmem:[%s4] sm:$0xff]
  %v102 = vld [vmem:[%s4 + $0x8] sm:$0xff]
  %v103 = vld [vmem:[%s4 + $0x10] sm:$0xff]
  %v104 = vld [vmem:[%s4 + $0x18] sm:$0xff]
  %v105 = vadd.f32 %v91, %v101
  %v106 = vadd.f32 %v94, %v102
  %v107 = vadd.f32 %v97, %v103
  %v108 = vadd.f32 %v100, %v104
  %v109 = vsub.f32 0.0, %v105
  %v110 = vsub.f32 0.0, %v106
  %v111 = vsub.f32 0.0, %v107
  %v112 = vsub.f32 0.0, %v108
  %v113 = vmul.f32 %v109, 1.442695
  %v114 = vpow.pop %v113
  %v115 = vmul.f32 %v110, 1.442695
  %v116 = vpow.pop %v115
  %v117 = vmul.f32 %v111, 1.442695
  %v118 = vpow.pop %v117
  %v119 = vmul.f32 %v112, 1.442695
  %v120 = vpow.pop %v119
  %v121 = vadd.f32 %v114, 1.0
  %v122 = vadd.f32 %v116, 1.0
  %v123 = vadd.f32 %v118, 1.0
  %v124 = vadd.f32 %v120, 1.0
  %v125 = vrcp.pop %v121
  %v126 = vmul.f32 1.0, %v125
  %v127 = vrcp.pop %v122
  %v128 = vmul.f32 1.0, %v127
  %v129 = vrcp.pop %v123
  %v130 = vmul.f32 1.0, %v129
  %v131 = vrcp.pop %v124
  %v132 = vmul.f32 1.0, %v131
  %134 = vset.pattern.permute.xlu0 0
  %135 = vperm.xlu0 %134, %v126
  %v136 = vpop.permute.xlu0 %135
  %139 = vset.pattern.permute.xlu0 0
  %140 = vperm.xlu0 %139, %v128
  %v141 = vpop.permute.xlu0 %140
  %144 = vset.pattern.permute.xlu0 0
  %145 = vperm.xlu0 %144, %v130
  %v146 = vpop.permute.xlu0 %145
  %149 = vset.pattern.permute.xlu0 0
  %150 = vperm.xlu0 %149, %v132
  %v151 = vpop.permute.xlu0 %150
  %v153 = vmul.f32 %v30, %v136
  %v154 = vmul.f32 %v31, %v141
  %v155 = vmul.f32 %v32, %v146
  %v156 = vmul.f32 %v33, %v151
  %v157 = vsub.f32 0.0, %v153
  %v158 = vsub.f32 0.0, %v154
  %v159 = vsub.f32 0.0, %v155
  %v160 = vsub.f32 0.0, %v156
  %v161 = vmul.f32 %v157, 1.442695
  %v162 = vpow.pop %v161
  %v163 = vmul.f32 %v158, 1.442695
  %v164 = vpow.pop %v163
  %v165 = vmul.f32 %v159, 1.442695
  %v166 = vpow.pop %v165
  %v167 = vmul.f32 %v160, 1.442695
  %v168 = vpow.pop %v167
  %v169 = vadd.f32 %v162, 1.0
  %v170 = vadd.f32 %v164, 1.0
  %v171 = vadd.f32 %v166, 1.0
  %v172 = vadd.f32 %v168, 1.0
  %v173 = vrcp.pop %v169
  %v174 = vmul.f32 1.0, %v173
  %v175 = vrcp.pop %v170
  %v176 = vmul.f32 1.0, %v175
  %v177 = vrcp.pop %v171
  %v178 = vmul.f32 1.0, %v177
  %v179 = vrcp.pop %v172
  %v180 = vmul.f32 1.0, %v179
  %v181 = vld [vmem:[%s5] sm:$0xff]
  %v182 = vld [vmem:[%s5 + $0x8] sm:$0x1]
  %vm183 = vcmask 1048064
  %184 = vrot.lane.b32.xlu0 %v174, 64
  %v185 = vpop.permute.xlu0 %184
  %v186 = vsel %vm183, %v185, %v174
  %187 = vrot.lane.b32.xlu0 %v176, 64
  %v188 = vpop.permute.xlu0 %187
  %v189 = vsel %vm183, %v188, %v176
  %190 = vrot.lane.b32.xlu0 %v178, 64
  %v191 = vpop.permute.xlu0 %190
  %v192 = vsel %vm183, %v191, %v178
  %193 = vrot.lane.b32.xlu0 %v180, 64
  %v194 = vpop.permute.xlu0 %193
  %v195 = vsel %vm183, %v194, %v180
  %196 = vrot.lane.b32.xlu0 %v186, 64
  %v197 = vpop.permute.xlu0 %196
  %198 = vrot.lane.b32.xlu0 %v189, 64
  %v199 = vpop.permute.xlu0 %198
  %200 = vrot.lane.b32.xlu0 %v192, 64
  %v201 = vpop.permute.xlu0 %200
  %202 = vrot.lane.b32.xlu0 %v195, 64
  %v203 = vpop.permute.xlu0 %202
  %v204 = vsel %vm183, %v197, %v174
  %v205 = vsel %vm183, %v199, %v176
  %v206 = vsel %vm183, %v201, %v178
  %v207 = vsel %vm183, %v203, %v180
  %v208 = vlaneseq
  %v209 = vshrl.u32 %v208, 7
  %v210 = vsub.s32 0, %v209
  %v211 = vrot.slane %v181, %v210
  %213 = vrot.lane.b32.xlu0 %v211, 55
  %v214 = vpop.permute.xlu0 %213
  %v216 = vmul.f32 %v204, %v214
  %v217 = vmul.f32 %v205, %v214
  %v218 = vmul.f32 %v206, %v214
  %v219 = vmul.f32 %v207, %v214
  %224 = vrot.lane.b32.xlu0 %v216, 73
  %v225 = vpop.permute.xlu0 %224
  %226 = vrot.lane.b32.xlu0 %v217, 73
  %v227 = vpop.permute.xlu0 %226
  %228 = vrot.lane.b32.xlu0 %v218, 73
  %v229 = vpop.permute.xlu0 %228
  %230 = vrot.lane.b32.xlu0 %v219, 73
  %v231 = vpop.permute.xlu0 %230
  %v236 = vmul.f32 %v174, %v225
  %v237 = vmul.f32 %v176, %v227
  %v238 = vmul.f32 %v178, %v229
  %v239 = vmul.f32 %v180, %v231
  %v240 = vsel %vm34, %v236, 0.0
  %v241 = vsel %vm34, %v237, 0.0
  %v242 = vadd.f32 %v240, %v241
  %v243 = vsel %vm34, %v238, 0.0
  %v244 = vadd.f32 %v242, %v243
  %v245 = vsel %vm34, %v239, 0.0
  %v246 = vadd.f32 %v244, %v245
  %v247 = vrot.slane %v246, 4
  %v248 = vadd.f32 %v246, %v247
  %v249 = vrot.slane %v248, 2
  %v250 = vadd.f32 %v248, %v249
  %v251 = vrot.slane %v250, 1
  %v252 = vadd.f32 %v250, %v251
  %v253 = vmul.f32 %v252, 0.03125
  %v254 = vlaneseq
  %v255 = vshrl.u32 %v254, 7
  %v256 = vsub.s32 1, %v255
  %v257 = vrot.slane %v181, %v256
  %259 = vrot.lane.b32.xlu0 %v257, 56
  %v260 = vpop.permute.xlu0 %259
  %v262 = vmul.f32 %v204, %v260
  %v263 = vmul.f32 %v205, %v260
  %v264 = vmul.f32 %v206, %v260
  %v265 = vmul.f32 %v207, %v260
  %270 = vrot.lane.b32.xlu0 %v262, 72
  %v271 = vpop.permute.xlu0 %270
  %272 = vrot.lane.b32.xlu0 %v263, 72
  %v273 = vpop.permute.xlu0 %272
  %274 = vrot.lane.b32.xlu0 %v264, 72
  %v275 = vpop.permute.xlu0 %274
  %276 = vrot.lane.b32.xlu0 %v265, 72
  %v277 = vpop.permute.xlu0 %276
  %v282 = vmul.f32 %v174, %v271
  %v283 = vmul.f32 %v176, %v273
  %v284 = vmul.f32 %v178, %v275
  %v285 = vmul.f32 %v180, %v277
  %v286 = vsel %vm34, %v282, 0.0
  %v287 = vsel %vm34, %v283, 0.0
  %v288 = vadd.f32 %v286, %v287
  %v289 = vsel %vm34, %v284, 0.0
  %v290 = vadd.f32 %v288, %v289
  %v291 = vsel %vm34, %v285, 0.0
  %v292 = vadd.f32 %v290, %v291
  %v293 = vrot.slane %v292, 4
  %v294 = vadd.f32 %v292, %v293
  %v295 = vrot.slane %v294, 2
  %v296 = vadd.f32 %v294, %v295
  %v297 = vrot.slane %v296, 1
  %v298 = vadd.f32 %v296, %v297
  %v299 = vmul.f32 %v298, 0.03125
  %v300 = vlaneseq
  %v301 = vshrl.u32 %v300, 7
  %v302 = vsub.s32 2, %v301
  %v303 = vrot.slane %v181, %v302
  %305 = vrot.lane.b32.xlu0 %v303, 57
  %v306 = vpop.permute.xlu0 %305
  %v308 = vmul.f32 %v204, %v306
  %v309 = vmul.f32 %v205, %v306
  %v310 = vmul.f32 %v206, %v306
  %v311 = vmul.f32 %v207, %v306
  %316 = vrot.lane.b32.xlu0 %v308, 71
  %v317 = vpop.permute.xlu0 %316
  %318 = vrot.lane.b32.xlu0 %v309, 71
  %v319 = vpop.permute.xlu0 %318
  %320 = vrot.lane.b32.xlu0 %v310, 71
  %v321 = vpop.permute.xlu0 %320
  %322 = vrot.lane.b32.xlu0 %v311, 71
  %v323 = vpop.permute.xlu0 %322
  %v328 = vmul.f32 %v174, %v317
  %v329 = vmul.f32 %v176, %v319
  %v330 = vmul.f32 %v178, %v321
  %v331 = vmul.f32 %v180, %v323
  %v332 = vsel %vm34, %v328, 0.0
  %v333 = vsel %vm34, %v329, 0.0
  %v334 = vadd.f32 %v332, %v333
  %v335 = vsel %vm34, %v330, 0.0
  %v336 = vadd.f32 %v334, %v335
  %v337 = vsel %vm34, %v331, 0.0
  %v338 = vadd.f32 %v336, %v337
  %v339 = vrot.slane %v338, 4
  %v340 = vadd.f32 %v338, %v339
  %v341 = vrot.slane %v340, 2
  %v342 = vadd.f32 %v340, %v341
  %v343 = vrot.slane %v342, 1
  %v344 = vadd.f32 %v342, %v343
  %v345 = vmul.f32 %v344, 0.03125
  %v346 = vlaneseq
  %v347 = vshrl.u32 %v346, 7
  %v348 = vsub.s32 3, %v347
  %v349 = vrot.slane %v181, %v348
  %351 = vrot.lane.b32.xlu0 %v349, 63
  %v352 = vpop.permute.xlu0 %351
  %v354 = vmul.f32 %v204, %v352
  %v355 = vmul.f32 %v205, %v352
  %v356 = vmul.f32 %v206, %v352
  %v357 = vmul.f32 %v207, %v352
  %362 = vrot.lane.b32.xlu0 %v354, 65
  %v363 = vpop.permute.xlu0 %362
  %364 = vrot.lane.b32.xlu0 %v355, 65
  %v365 = vpop.permute.xlu0 %364
  %366 = vrot.lane.b32.xlu0 %v356, 65
  %v367 = vpop.permute.xlu0 %366
  %368 = vrot.lane.b32.xlu0 %v357, 65
  %v369 = vpop.permute.xlu0 %368
  %v374 = vmul.f32 %v174, %v363
  %v375 = vmul.f32 %v176, %v365
  %v376 = vmul.f32 %v178, %v367
  %v377 = vmul.f32 %v180, %v369
  %v378 = vsel %vm34, %v374, 0.0
  %v379 = vsel %vm34, %v375, 0.0
  %v380 = vadd.f32 %v378, %v379
  %v381 = vsel %vm34, %v376, 0.0
  %v382 = vadd.f32 %v380, %v381
  %v383 = vsel %vm34, %v377, 0.0
  %v384 = vadd.f32 %v382, %v383
  %v385 = vrot.slane %v384, 4
  %v386 = vadd.f32 %v384, %v385
  %v387 = vrot.slane %v386, 2
  %v388 = vadd.f32 %v386, %v387
  %v389 = vrot.slane %v388, 1
  %v390 = vadd.f32 %v388, %v389
  %v391 = vmul.f32 %v390, 0.03125
  %v392 = vmul.f32 %v174, %v174
  %v393 = vmul.f32 %v176, %v176
  %v394 = vmul.f32 %v178, %v178
  %v395 = vmul.f32 %v180, %v180
  %v396 = vsel %vm34, %v392, 0.0
  %v397 = vsel %vm34, %v393, 0.0
  %v398 = vadd.f32 %v396, %v397
  %v399 = vsel %vm34, %v394, 0.0
  %v400 = vadd.f32 %v398, %v399
  %v401 = vsel %vm34, %v395, 0.0
  %v402 = vadd.f32 %v400, %v401
  %v403 = vrot.slane %v402, 4
  %v404 = vadd.f32 %v402, %v403
  %v405 = vrot.slane %v404, 2
  %v406 = vadd.f32 %v404, %v405
  %v407 = vrot.slane %v406, 1
  %v408 = vadd.f32 %v406, %v407
  %v409 = vmul.f32 %v408, 0.03125
  %v410 = vlaneseq
  %v411 = vshrl.u32 %v410, 7
  %v412 = vsub.s32 5, %v411
  %v413 = vrot.slane %v181, %v412
  %415 = vrot.lane.b32.xlu0 %v413, 1
  %v416 = vpop.permute.xlu0 %415
  %v418 = vmul.f32 %v204, %v416
  %v419 = vmul.f32 %v205, %v416
  %v420 = vmul.f32 %v206, %v416
  %v421 = vmul.f32 %v207, %v416
  %426 = vrot.lane.b32.xlu0 %v418, 127
  %v427 = vpop.permute.xlu0 %426
  %428 = vrot.lane.b32.xlu0 %v419, 127
  %v429 = vpop.permute.xlu0 %428
  %430 = vrot.lane.b32.xlu0 %v420, 127
  %v431 = vpop.permute.xlu0 %430
  %432 = vrot.lane.b32.xlu0 %v421, 127
  %v433 = vpop.permute.xlu0 %432
  %v438 = vmul.f32 %v174, %v427
  %v439 = vmul.f32 %v176, %v429
  %v440 = vmul.f32 %v178, %v431
  %v441 = vmul.f32 %v180, %v433
  %v442 = vsel %vm34, %v438, 0.0
  %v443 = vsel %vm34, %v439, 0.0
  %v444 = vadd.f32 %v442, %v443
  %v445 = vsel %vm34, %v440, 0.0
  %v446 = vadd.f32 %v444, %v445
  %v447 = vsel %vm34, %v441, 0.0
  %v448 = vadd.f32 %v446, %v447
  %v449 = vrot.slane %v448, 4
  %v450 = vadd.f32 %v448, %v449
  %v451 = vrot.slane %v450, 2
  %v452 = vadd.f32 %v450, %v451
  %v453 = vrot.slane %v452, 1
  %v454 = vadd.f32 %v452, %v453
  %v455 = vmul.f32 %v454, 0.03125
  %v456 = vlaneseq
  %v457 = vshrl.u32 %v456, 7
  %v458 = vsub.s32 6, %v457
  %v459 = vrot.slane %v181, %v458
  %461 = vrot.lane.b32.xlu0 %v459, 7
  %v462 = vpop.permute.xlu0 %461
  %v464 = vmul.f32 %v204, %v462
  %v465 = vmul.f32 %v205, %v462
  %v466 = vmul.f32 %v206, %v462
  %v467 = vmul.f32 %v207, %v462
  %472 = vrot.lane.b32.xlu0 %v464, 121
  %v473 = vpop.permute.xlu0 %472
  %474 = vrot.lane.b32.xlu0 %v465, 121
  %v475 = vpop.permute.xlu0 %474
  %476 = vrot.lane.b32.xlu0 %v466, 121
  %v477 = vpop.permute.xlu0 %476
  %478 = vrot.lane.b32.xlu0 %v467, 121
  %v479 = vpop.permute.xlu0 %478
  %v484 = vmul.f32 %v174, %v473
  %v485 = vmul.f32 %v176, %v475
  %v486 = vmul.f32 %v178, %v477
  %v487 = vmul.f32 %v180, %v479
  %v488 = vsel %vm34, %v484, 0.0
  %v489 = vsel %vm34, %v485, 0.0
  %v490 = vadd.f32 %v488, %v489
  %v491 = vsel %vm34, %v486, 0.0
  %v492 = vadd.f32 %v490, %v491
  %v493 = vsel %vm34, %v487, 0.0
  %v494 = vadd.f32 %v492, %v493
  %v495 = vrot.slane %v494, 4
  %v496 = vadd.f32 %v494, %v495
  %v497 = vrot.slane %v496, 2
  %v498 = vadd.f32 %v496, %v497
  %v499 = vrot.slane %v498, 1
  %v500 = vadd.f32 %v498, %v499
  %v501 = vmul.f32 %v500, 0.03125
  %v502 = vlaneseq
  %v503 = vshrl.u32 %v502, 7
  %v504 = vsub.s32 7, %v503
  %v505 = vrot.slane %v181, %v504
  %507 = vrot.lane.b32.xlu0 %v505, 8
  %v508 = vpop.permute.xlu0 %507
  %v510 = vmul.f32 %v204, %v508
  %v511 = vmul.f32 %v205, %v508
  %v512 = vmul.f32 %v206, %v508
  %v513 = vmul.f32 %v207, %v508
  %518 = vrot.lane.b32.xlu0 %v510, 120
  %v519 = vpop.permute.xlu0 %518
  %520 = vrot.lane.b32.xlu0 %v511, 120
  %v521 = vpop.permute.xlu0 %520
  %522 = vrot.lane.b32.xlu0 %v512, 120
  %v523 = vpop.permute.xlu0 %522
  %524 = vrot.lane.b32.xlu0 %v513, 120
  %v525 = vpop.permute.xlu0 %524
  %v530 = vmul.f32 %v174, %v519
  %v531 = vmul.f32 %v176, %v521
  %v532 = vmul.f32 %v178, %v523
  %v533 = vmul.f32 %v180, %v525
  %v534 = vsel %vm34, %v530, 0.0
  %v535 = vsel %vm34, %v531, 0.0
  %v536 = vadd.f32 %v534, %v535
  %v537 = vsel %vm34, %v532, 0.0
  %v538 = vadd.f32 %v536, %v537
  %v539 = vsel %vm34, %v533, 0.0
  %v540 = vadd.f32 %v538, %v539
  %v541 = vrot.slane %v540, 4
  %v542 = vadd.f32 %v540, %v541
  %v543 = vrot.slane %v542, 2
  %v544 = vadd.f32 %v542, %v543
  %v545 = vrot.slane %v544, 1
  %v546 = vadd.f32 %v544, %v545
  %v547 = vmul.f32 %v546, 0.03125
  %v548 = vlaneseq
  %v549 = vshrl.u32 %v548, 7
  %v550 = vsub.s32 0, %v549
  %v551 = vrot.slane %v182, %v550
  %553 = vrot.lane.b32.xlu0 %v551, 9
  %v554 = vpop.permute.xlu0 %553
  %v556 = vmul.f32 %v204, %v554
  %v557 = vmul.f32 %v205, %v554
  %v558 = vmul.f32 %v206, %v554
  %v559 = vmul.f32 %v207, %v554
  %564 = vrot.lane.b32.xlu0 %v556, 119
  %v565 = vpop.permute.xlu0 %564
  %566 = vrot.lane.b32.xlu0 %v557, 119
  %v567 = vpop.permute.xlu0 %566
  %568 = vrot.lane.b32.xlu0 %v558, 119
  %v569 = vpop.permute.xlu0 %568
  %570 = vrot.lane.b32.xlu0 %v559, 119
  %v571 = vpop.permute.xlu0 %570
  %v576 = vmul.f32 %v174, %v565
  %v577 = vmul.f32 %v176, %v567
  %v578 = vmul.f32 %v178, %v569
  %v579 = vmul.f32 %v180, %v571
  %v580 = vsel %vm34, %v576, 0.0
  %v581 = vsel %vm34, %v577, 0.0
  %v582 = vadd.f32 %v580, %v581
  %v583 = vsel %vm34, %v578, 0.0
  %v584 = vadd.f32 %v582, %v583
  %v585 = vsel %vm34, %v579, 0.0
  %v586 = vadd.f32 %v584, %v585
  %v587 = vrot.slane %v586, 4
  %v588 = vadd.f32 %v586, %v587
  %v589 = vrot.slane %v588, 2
  %v590 = vadd.f32 %v588, %v589
  %v591 = vrot.slane %v590, 1
  %v592 = vadd.f32 %v590, %v591
  %v593 = vmul.f32 %v592, 0.03125
  %v594 = vmax.f32 %v253, %v299
  %v595 = vmax.f32 %v594, %v345
  %v596 = vmax.f32 %v595, %v391
  %v597 = vmax.f32 %v596, %v409
  %v598 = vmax.f32 %v597, %v455
  %v599 = vmax.f32 %v598, %v501
  %v600 = vmax.f32 %v599, %v547
  %v601 = vmax.f32 %v600, %v593
  %v602 = vsub.f32 %v253, %v601
  %v603 = vmul.f32 %v602, 1.442695
  %v604 = vpow.pop %v603
  %v605 = vsub.f32 %v299, %v601
  %v606 = vmul.f32 %v605, 1.442695
  %v607 = vpow.pop %v606
  %v608 = vsub.f32 %v345, %v601
  %v609 = vmul.f32 %v608, 1.442695
  %v610 = vpow.pop %v609
  %v611 = vsub.f32 %v391, %v601
  %v612 = vmul.f32 %v611, 1.442695
  %v613 = vpow.pop %v612
  %v614 = vsub.f32 %v409, %v601
  %v615 = vmul.f32 %v614, 1.442695
  %v616 = vpow.pop %v615
  %v617 = vsub.f32 %v455, %v601
  %v618 = vmul.f32 %v617, 1.442695
  %v619 = vpow.pop %v618
  %v620 = vsub.f32 %v501, %v601
  %v621 = vmul.f32 %v620, 1.442695
  %v622 = vpow.pop %v621
  %v623 = vsub.f32 %v547, %v601
  %v624 = vmul.f32 %v623, 1.442695
  %v625 = vpow.pop %v624
  %v626 = vsub.f32 %v593, %v601
  %v627 = vmul.f32 %v626, 1.442695
  %v628 = vpow.pop %v627
  %v629 = vadd.f32 %v604, %v607
  %v630 = vadd.f32 %v629, %v610
  %v631 = vadd.f32 %v630, %v613
  %v632 = vadd.f32 %v631, %v616
  %v633 = vadd.f32 %v632, %v619
  %v634 = vadd.f32 %v633, %v622
  %v635 = vadd.f32 %v634, %v625
  %v636 = vadd.f32 %v635, %v628
  %v637 = vrcp.pop %v636
  %v638 = vmul.f32 1.0, %v637
  %v639 = vmul.f32 %v604, %v638
  %640 = vrot.lane.b32.xlu0 %v153, 64
  %v641 = vpop.permute.xlu0 %640
  %v642 = vsel %vm183, %v641, %v153
  %643 = vrot.lane.b32.xlu0 %v154, 64
  %v644 = vpop.permute.xlu0 %643
  %v645 = vsel %vm183, %v644, %v154
  %646 = vrot.lane.b32.xlu0 %v155, 64
  %v647 = vpop.permute.xlu0 %646
  %v648 = vsel %vm183, %v647, %v155
  %649 = vrot.lane.b32.xlu0 %v156, 64
  %v650 = vpop.permute.xlu0 %649
  %v651 = vsel %vm183, %v650, %v156
  %652 = vrot.lane.b32.xlu0 %v642, 64
  %v653 = vpop.permute.xlu0 %652
  %654 = vrot.lane.b32.xlu0 %v645, 64
  %v655 = vpop.permute.xlu0 %654
  %656 = vrot.lane.b32.xlu0 %v648, 64
  %v657 = vpop.permute.xlu0 %656
  %658 = vrot.lane.b32.xlu0 %v651, 64
  %v659 = vpop.permute.xlu0 %658
  %v660 = vsel %vm183, %v653, %v153
  %v661 = vsel %vm183, %v655, %v154
  %v662 = vsel %vm183, %v657, %v155
  %v663 = vsel %vm183, %v659, %v156
  %v664 = vmul.f32 %v660, %v214
  %v665 = vmul.f32 %v661, %v214
  %v666 = vmul.f32 %v662, %v214
  %v667 = vmul.f32 %v663, %v214
  %672 = vrot.lane.b32.xlu0 %v664, 73
  %v673 = vpop.permute.xlu0 %672
  %674 = vrot.lane.b32.xlu0 %v665, 73
  %v675 = vpop.permute.xlu0 %674
  %676 = vrot.lane.b32.xlu0 %v666, 73
  %v677 = vpop.permute.xlu0 %676
  %678 = vrot.lane.b32.xlu0 %v667, 73
  %v679 = vpop.permute.xlu0 %678
  %v684 = vmul.f32 %v639, %v673
  %v685 = vmul.f32 %v639, %v675
  %v686 = vmul.f32 %v639, %v677
  %v687 = vmul.f32 %v639, %v679
  %v688 = vadd.f32 %v684, 0.0
  %v689 = vadd.f32 %v685, 0.0
  %v690 = vadd.f32 %v686, 0.0
  %v691 = vadd.f32 %v687, 0.0
  %v692 = vmul.f32 %v607, %v638
  %v693 = vmul.f32 %v660, %v260
  %v694 = vmul.f32 %v661, %v260
  %v695 = vmul.f32 %v662, %v260
  %v696 = vmul.f32 %v663, %v260
  %701 = vrot.lane.b32.xlu0 %v693, 72
  %v702 = vpop.permute.xlu0 %701
  %703 = vrot.lane.b32.xlu0 %v694, 72
  %v704 = vpop.permute.xlu0 %703
  %705 = vrot.lane.b32.xlu0 %v695, 72
  %v706 = vpop.permute.xlu0 %705
  %707 = vrot.lane.b32.xlu0 %v696, 72
  %v708 = vpop.permute.xlu0 %707
  %v713 = vmul.f32 %v692, %v702
  %v714 = vmul.f32 %v692, %v704
  %v715 = vmul.f32 %v692, %v706
  %v716 = vmul.f32 %v692, %v708
  %v717 = vadd.f32 %v688, %v713
  %v718 = vadd.f32 %v689, %v714
  %v719 = vadd.f32 %v690, %v715
  %v720 = vadd.f32 %v691, %v716
  %v721 = vmul.f32 %v610, %v638
  %v722 = vmul.f32 %v660, %v306
  %v723 = vmul.f32 %v661, %v306
  %v724 = vmul.f32 %v662, %v306
  %v725 = vmul.f32 %v663, %v306
  %730 = vrot.lane.b32.xlu0 %v722, 71
  %v731 = vpop.permute.xlu0 %730
  %732 = vrot.lane.b32.xlu0 %v723, 71
  %v733 = vpop.permute.xlu0 %732
  %734 = vrot.lane.b32.xlu0 %v724, 71
  %v735 = vpop.permute.xlu0 %734
  %736 = vrot.lane.b32.xlu0 %v725, 71
  %v737 = vpop.permute.xlu0 %736
  %v742 = vmul.f32 %v721, %v731
  %v743 = vmul.f32 %v721, %v733
  %v744 = vmul.f32 %v721, %v735
  %v745 = vmul.f32 %v721, %v737
  %v746 = vadd.f32 %v717, %v742
  %v747 = vadd.f32 %v718, %v743
  %v748 = vadd.f32 %v719, %v744
  %v749 = vadd.f32 %v720, %v745
  %v750 = vmul.f32 %v613, %v638
  %v751 = vmul.f32 %v660, %v352
  %v752 = vmul.f32 %v661, %v352
  %v753 = vmul.f32 %v662, %v352
  %v754 = vmul.f32 %v663, %v352
  %759 = vrot.lane.b32.xlu0 %v751, 65
  %v760 = vpop.permute.xlu0 %759
  %761 = vrot.lane.b32.xlu0 %v752, 65
  %v762 = vpop.permute.xlu0 %761
  %763 = vrot.lane.b32.xlu0 %v753, 65
  %v764 = vpop.permute.xlu0 %763
  %765 = vrot.lane.b32.xlu0 %v754, 65
  %v766 = vpop.permute.xlu0 %765
  %v771 = vmul.f32 %v750, %v760
  %v772 = vmul.f32 %v750, %v762
  %v773 = vmul.f32 %v750, %v764
  %v774 = vmul.f32 %v750, %v766
  %v775 = vadd.f32 %v746, %v771
  %v776 = vadd.f32 %v747, %v772
  %v777 = vadd.f32 %v748, %v773
  %v778 = vadd.f32 %v749, %v774
  %v779 = vmul.f32 %v616, %v638
  %v780 = vmul.f32 %v779, %v153
  %v781 = vmul.f32 %v779, %v154
  %v782 = vmul.f32 %v779, %v155
  %v783 = vmul.f32 %v779, %v156
  %v784 = vadd.f32 %v775, %v780
  %v785 = vadd.f32 %v776, %v781
  %v786 = vadd.f32 %v777, %v782
  %v787 = vadd.f32 %v778, %v783
  %v788 = vmul.f32 %v619, %v638
  %v789 = vmul.f32 %v660, %v416
  %v790 = vmul.f32 %v661, %v416
  %v791 = vmul.f32 %v662, %v416
  %v792 = vmul.f32 %v663, %v416
  %797 = vrot.lane.b32.xlu0 %v789, 127
  %v798 = vpop.permute.xlu0 %797
  %799 = vrot.lane.b32.xlu0 %v790, 127
  %v800 = vpop.permute.xlu0 %799
  %801 = vrot.lane.b32.xlu0 %v791, 127
  %v802 = vpop.permute.xlu0 %801
  %803 = vrot.lane.b32.xlu0 %v792, 127
  %v804 = vpop.permute.xlu0 %803
  %v809 = vmul.f32 %v788, %v798
  %v810 = vmul.f32 %v788, %v800
  %v811 = vmul.f32 %v788, %v802
  %v812 = vmul.f32 %v788, %v804
  %v813 = vadd.f32 %v784, %v809
  %v814 = vadd.f32 %v785, %v810
  %v815 = vadd.f32 %v786, %v811
  %v816 = vadd.f32 %v787, %v812
  %v817 = vmul.f32 %v622, %v638
  %v818 = vmul.f32 %v660, %v462
  %v819 = vmul.f32 %v661, %v462
  %v820 = vmul.f32 %v662, %v462
  %v821 = vmul.f32 %v663, %v462
  %826 = vrot.lane.b32.xlu0 %v818, 121
  %v827 = vpop.permute.xlu0 %826
  %828 = vrot.lane.b32.xlu0 %v819, 121
  %v829 = vpop.permute.xlu0 %828
  %830 = vrot.lane.b32.xlu0 %v820, 121
  %v831 = vpop.permute.xlu0 %830
  %832 = vrot.lane.b32.xlu0 %v821, 121
  %v833 = vpop.permute.xlu0 %832
  %v838 = vmul.f32 %v817, %v827
  %v839 = vmul.f32 %v817, %v829
  %v840 = vmul.f32 %v817, %v831
  %v841 = vmul.f32 %v817, %v833
  %v842 = vadd.f32 %v813, %v838
  %v843 = vadd.f32 %v814, %v839
  %v844 = vadd.f32 %v815, %v840
  %v845 = vadd.f32 %v816, %v841
  %v846 = vmul.f32 %v625, %v638
  %v847 = vmul.f32 %v660, %v508
  %v848 = vmul.f32 %v661, %v508
  %v849 = vmul.f32 %v662, %v508
  %v850 = vmul.f32 %v663, %v508
  %855 = vrot.lane.b32.xlu0 %v847, 120
  %v856 = vpop.permute.xlu0 %855
  %857 = vrot.lane.b32.xlu0 %v848, 120
  %v858 = vpop.permute.xlu0 %857
  %859 = vrot.lane.b32.xlu0 %v849, 120
  %v860 = vpop.permute.xlu0 %859
  %861 = vrot.lane.b32.xlu0 %v850, 120
  %v862 = vpop.permute.xlu0 %861
  %v867 = vmul.f32 %v846, %v856
  %v868 = vmul.f32 %v846, %v858
  %v869 = vmul.f32 %v846, %v860
  %v870 = vmul.f32 %v846, %v862
  %v871 = vadd.f32 %v842, %v867
  %v872 = vadd.f32 %v843, %v868
  %v873 = vadd.f32 %v844, %v869
  %v874 = vadd.f32 %v845, %v870
  %v875 = vmul.f32 %v628, %v638
  %v876 = vmul.f32 %v660, %v554
  %v877 = vmul.f32 %v661, %v554
  %v878 = vmul.f32 %v662, %v554
  %v879 = vmul.f32 %v663, %v554
  %884 = vrot.lane.b32.xlu0 %v876, 119
  %v885 = vpop.permute.xlu0 %884
  %886 = vrot.lane.b32.xlu0 %v877, 119
  %v887 = vpop.permute.xlu0 %886
  %888 = vrot.lane.b32.xlu0 %v878, 119
  %v889 = vpop.permute.xlu0 %888
  %890 = vrot.lane.b32.xlu0 %v879, 119
  %v891 = vpop.permute.xlu0 %890
  %v896 = vmul.f32 %v875, %v885
  %v897 = vmul.f32 %v875, %v887
  %v898 = vmul.f32 %v875, %v889
  %v899 = vmul.f32 %v875, %v891
  %v900 = vadd.f32 %v871, %v896
  %v901 = vadd.f32 %v872, %v897
  %v902 = vadd.f32 %v873, %v898
  %v903 = vadd.f32 %v874, %v899
  %v904 = vpack.c.bf16 %v154, %v153
  %v905 = vpack.c.bf16 %v156, %v155
  %v906 = vpack.c.bf16 %v901, %v900
  %v907 = vpack.c.bf16 %v903, %v902
  %v908 = vld [vmem:[%s6] sm:$0xf]
  %v909 = vld [vmem:[%s6 + $0x4] sm:$0xf]
  %v910 = vld [vmem:[%s6 + $0x8] sm:$0xf]
  %v911 = vld [vmem:[%s6 + $0xc] sm:$0xf]
  %v912 = vld [vmem:[%s7] sm:$0xf]
  %v913 = vld [vmem:[%s7 + $0x4] sm:$0xf]
  %v914 = vld [vmem:[%s7 + $0x8] sm:$0xf]
  %v915 = vld [vmem:[%s7 + $0xc] sm:$0xf]
  %v920 = vunpack.c.l.b16 %v912
  %v921 = vunpack.c.l.b16 %v913
  %v922 = vunpack.c.l.b16 %v914
  %v923 = vunpack.c.l.b16 %v915
  %v924 = vpack.c.b16 %v921, %v920
  %v925 = vpack.c.b16 %v923, %v922
  %v927 = vsel %vm34, %v924, 0
  %v930 = vsel %vm34, %v925, 0
  %v933 = vsel %vm34, %v906, 0
  %v936 = vsel %vm34, %v907, 0
  %938 = vmatprep.subr.bf16.mxu0 0
  %939 = vmatpush1.bf16.xpose.msra.mxu0 %v933
  %940 = vmatprep.subr.bf16.mxu0 0
  %941 = vmatpush1.bf16.xpose.msra.mxu0 %v936
  %942 = vmatprep.subr.bf16.mxu0 0
  %943 = vmatpush1.bf16.xpose.msra.mxu0 0
  %944 = vmatprep.subr.bf16.mxu0 0
  %945 = vmatpush1.bf16.xpose.msra.mxu0 0
  %946 = vmatprep.subr.bf16.mxu0 0
  %947 = vmatpush1.bf16.xpose.msra.mxu0 0
  %948 = vmatprep.subr.bf16.mxu0 0
  %949 = vmatpush1.bf16.xpose.msra.mxu0 0
  %950 = vmatprep.subr.bf16.mxu0 0
  %951 = vmatpush1.bf16.xpose.msra.mxu0 0
  %952 = vmatprep.subr.bf16.mxu0 0
  %953 = vmatpush1.bf16.xpose.msra.mxu0 0
  %954 = vmatprep.subr.bf16.mxu0 0
  %955 = vmatpush1.bf16.xpose.msra.mxu0 0
  %956 = vmatprep.subr.bf16.mxu0 0
  %957 = vmatpush1.bf16.xpose.msra.mxu0 0
  %958 = vmatprep.subr.bf16.mxu0 0
  %959 = vmatpush1.bf16.xpose.msra.mxu0 0
  %960 = vmatprep.subr.bf16.mxu0 0
  %961 = vmatpush1.bf16.xpose.msra.mxu0 0
  %962 = vmatprep.subr.bf16.mxu0 0
  %963 = vmatpush1.bf16.xpose.msra.mxu0 0
  %964 = vmatprep.subr.bf16.mxu0 0
  %965 = vmatpush1.bf16.xpose.msra.mxu0 0
  %966 = vmatprep.subr.bf16.mxu0 0
  %967 = vmatpush1.bf16.xpose.msra.mxu0 0
  %968 = vmatprep.subr.bf16.mxu0 0
  %969 = vmatpush1.bf16.xpose.msra.mxu0 0
  %970 = vmatprep.mubr.bf16.mxu0 0
  %971 = vmatmul.mubr.bf16.gmra.mrb[0].mxu0 %v927
  %v972 = vpop.f32.mrb[0].mxu0
  %v973 = vadd.f32 0.0, %v972
  %v974 = vpop.f32.mrb[0].mxu0
  %v975 = vpop.f32.mrb[0].mxu0
  %v976 = vadd.f32 0.0, %v975
  %v977 = vpop.f32.mrb[0].mxu0
  %978 = vmatprep.mubr.bf16.mxu0 0
  %979 = vmatmul.mubr.bf16.gmra.mrb[0].mxu0 %v930
  %v980 = vpop.f32.mrb[0].mxu0
  %v981 = vadd.f32 0.0, %v980
  %v982 = vpop.f32.mrb[0].mxu0
  %v983 = vpop.f32.mrb[0].mxu0
  %v984 = vadd.f32 0.0, %v983
  %v985 = vpop.f32.mrb[0].mxu0
  %986 = vdwg.mxu0
  %v991 = vunpack.c.l.b16 %v908
  %v992 = vunpack.c.l.b16 %v909
  %v993 = vunpack.c.l.b16 %v910
  %v994 = vunpack.c.l.b16 %v911
  %v995 = vpack.c.b16 %v992, %v991
  %v996 = vpack.c.b16 %v994, %v993
  %v998 = vsel %vm34, %v995, 0
  %v1001 = vsel %vm34, %v996, 0
  %v1004 = vsel %vm34, %v904, 0
  %v1007 = vsel %vm34, %v905, 0
  %1009 = vmatprep.subr.bf16.mxu0 0
  %1010 = vmatpush1.bf16.xpose.msra.mxu0 %v1004
  %1011 = vmatprep.subr.bf16.mxu0 0
  %1012 = vmatpush1.bf16.xpose.msra.mxu0 %v1007
  %1013 = vmatprep.subr.bf16.mxu0 0
  %1014 = vmatpush1.bf16.xpose.msra.mxu0 0
  %1015 = vmatprep.subr.bf16.mxu0 0
  %1016 = vmatpush1.bf16.xpose.msra.mxu0 0
  %1017 = vmatprep.subr.bf16.mxu0 0
  %1018 = vmatpush1.bf16.xpose.msra.mxu0 0
  %1019 = vmatprep.subr.bf16.mxu0 0
  %1020 = vmatpush1.bf16.xpose.msra.mxu0 0
  %1021 = vmatprep.subr.bf16.mxu0 0
  %1022 = vmatpush1.bf16.xpose.msra.mxu0 0
  %1023 = vmatprep.subr.bf16.mxu0 0
  %1024 = vmatpush1.bf16.xpose.msra.mxu0 0
  %1025 = vmatprep.subr.bf16.mxu0 0
  %1026 = vmatpush1.bf16.xpose.msra.mxu0 0
  %1027 = vmatprep.subr.bf16.mxu0 0
  %1028 = vmatpush1.bf16.xpose.msra.mxu0 0
  %1029 = vmatprep.subr.bf16.mxu0 0
  %1030 = vmatpush1.bf16.xpose.msra.mxu0 0
  %1031 = vmatprep.subr.bf16.mxu0 0
  %1032 = vmatpush1.bf16.xpose.msra.mxu0 0
  %1033 = vmatprep.subr.bf16.mxu0 0
  %1034 = vmatpush1.bf16.xpose.msra.mxu0 0
  %1035 = vmatprep.subr.bf16.mxu0 0
  %1036 = vmatpush1.bf16.xpose.msra.mxu0 0
  %1037 = vmatprep.subr.bf16.mxu0 0
  %1038 = vmatpush1.bf16.xpose.msra.mxu0 0
  %1039 = vmatprep.subr.bf16.mxu0 0
  %1040 = vmatpush1.bf16.xpose.msra.mxu0 0
  %1041 = vmatprep.mubr.bf16.mxu0 0
  %1042 = vmatmul.mubr.bf16.gmra.mrb[0].mxu0 %v998
  %v1043 = vpop.f32.mrb[0].mxu0
  %v1044 = vadd.f32 %v973, %v1043
  %v1045 = vpop.f32.mrb[0].mxu0
  %v1046 = vpop.f32.mrb[0].mxu0
  %v1047 = vadd.f32 %v976, %v1046
  %v1048 = vpop.f32.mrb[0].mxu0
  %1049 = vmatprep.mubr.bf16.mxu0 0
  %1050 = vmatmul.mubr.bf16.gmra.mrb[0].mxu0 %v1001
  %v1051 = vpop.f32.mrb[0].mxu0
  %v1052 = vadd.f32 %v981, %v1051
  %v1053 = vpop.f32.mrb[0].mxu0
  %v1054 = vpop.f32.mrb[0].mxu0
  %v1055 = vadd.f32 %v984, %v1054
  %v1056 = vpop.f32.mrb[0].mxu0
  %1057 = vdwg.mxu0
  %s1058 = scalar_lea.vmem %s6, 16
  %v1059 = vld [vmem:[%s1058] sm:$0xf]
  %v1060 = vld [vmem:[%s1058 + $0x4] sm:$0xf]
  %v1061 = vld [vmem:[%s1058 + $0x8] sm:$0xf]
  %v1062 = vld [vmem:[%s1058 + $0xc] sm:$0xf]
  %s1063 = scalar_lea.vmem %s7, 16
  %v1064 = vld [vmem:[%s1063] sm:$0xf]
  %v1065 = vld [vmem:[%s1063 + $0x4] sm:$0xf]
  %v1066 = vld [vmem:[%s1063 + $0x8] sm:$0xf]
  %v1067 = vld [vmem:[%s1063 + $0xc] sm:$0xf]
  %v1072 = vunpack.c.l.b16 %v1064
  %v1073 = vunpack.c.l.b16 %v1065
  %v1074 = vunpack.c.l.b16 %v1066
  %v1075 = vunpack.c.l.b16 %v1067
  %v1076 = vpack.c.b16 %v1073, %v1072
  %v1077 = vpack.c.b16 %v1075, %v1074
  %v1079 = vsel %vm34, %v1076, 0
  %v1082 = vsel %vm34, %v1077, 0
  %1084 = vmatprep.subr.bf16.mxu0 0
  %1085 = vmatpush1.bf16.xpose.msra.mxu0 %v933
  %1086 = vmatprep.subr.bf16.mxu0 0
  %1087 = vmatpush1.bf16.xpose.msra.mxu0 %v936
  %1088 = vmatprep.subr.bf16.mxu0 0
  %1089 = vmatpush1.bf16.xpose.msra.mxu0 0
  %1090 = vmatprep.subr.bf16.mxu0 0
  %1091 = vmatpush1.bf16.xpose.msra.mxu0 0
  %1092 = vmatprep.subr.bf16.mxu0 0
  %1093 = vmatpush1.bf16.xpose.msra.mxu0 0
  %1094 = vmatprep.subr.bf16.mxu0 0
  %1095 = vmatpush1.bf16.xpose.msra.mxu0 0
  %1096 = vmatprep.subr.bf16.mxu0 0
  %1097 = vmatpush1.bf16.xpose.msra.mxu0 0
  %1098 = vmatprep.subr.bf16.mxu0 0
  %1099 = vmatpush1.bf16.xpose.msra.mxu0 0
  %1100 = vmatprep.subr.bf16.mxu0 0
  %1101 = vmatpush1.bf16.xpose.msra.mxu0 0
  %1102 = vmatprep.subr.bf16.mxu0 0
  %1103 = vmatpush1.bf16.xpose.msra.mxu0 0
  %1104 = vmatprep.subr.bf16.mxu0 0
  %1105 = vmatpush1.bf16.xpose.msra.mxu0 0
  %1106 = vmatprep.subr.bf16.mxu0 0
  %1107 = vmatpush1.bf16.xpose.msra.mxu0 0
  %1108 = vmatprep.subr.bf16.mxu0 0
  %1109 = vmatpush1.bf16.xpose.msra.mxu0 0
  %1110 = vmatprep.subr.bf16.mxu0 0
  %1111 = vmatpush1.bf16.xpose.msra.mxu0 0
  %1112 = vmatprep.subr.bf16.mxu0 0
  %1113 = vmatpush1.bf16.xpose.msra.mxu0 0
  %1114 = vmatprep.subr.bf16.mxu0 0
  %1115 = vmatpush1.bf16.xpose.msra.mxu0 0
  %1116 = vmatprep.mubr.bf16.mxu0 0
  %1117 = vmatmul.mubr.bf16.gmra.mrb[0].mxu0 %v1079
  %v1118 = vpop.f32.mrb[0].mxu0
  %v1119 = vadd.f32 0.0, %v1118
  %v1120 = vpop.f32.mrb[0].mxu0
  %v1121 = vpop.f32.mrb[0].mxu0
  %v1122 = vadd.f32 0.0, %v1121
  %v1123 = vpop.f32.mrb[0].mxu0
  %1124 = vmatprep.mubr.bf16.mxu0 0
  %1125 = vmatmul.mubr.bf16.gmra.mrb[0].mxu0 %v1082
  %v1126 = vpop.f32.mrb[0].mxu0
  %v1127 = vadd.f32 0.0, %v1126
  %v1128 = vpop.f32.mrb[0].mxu0
  %v1129 = vpop.f32.mrb[0].mxu0
  %v1130 = vadd.f32 0.0, %v1129
  %v1131 = vpop.f32.mrb[0].mxu0
  %1132 = vdwg.mxu0
  %v1137 = vunpack.c.l.b16 %v1059
  %v1138 = vunpack.c.l.b16 %v1060
  %v1139 = vunpack.c.l.b16 %v1061
  %v1140 = vunpack.c.l.b16 %v1062
  %v1141 = vpack.c.b16 %v1138, %v1137
  %v1142 = vpack.c.b16 %v1140, %v1139
  %v1144 = vsel %vm34, %v1141, 0
  %v1147 = vsel %vm34, %v1142, 0
  %1149 = vmatprep.subr.bf16.mxu0 0
  %1150 = vmatpush1.bf16.xpose.msra.mxu0 %v1004
  %1151 = vmatprep.subr.bf16.mxu0 0
  %1152 = vmatpush1.bf16.xpose.msra.mxu0 %v1007
  %1153 = vmatprep.subr.bf16.mxu0 0
  %1154 = vmatpush1.bf16.xpose.msra.mxu0 0
  %1155 = vmatprep.subr.bf16.mxu0 0
  %1156 = vmatpush1.bf16.xpose.msra.mxu0 0
  %1157 = vmatprep.subr.bf16.mxu0 0
  %1158 = vmatpush1.bf16.xpose.msra.mxu0 0
  %1159 = vmatprep.subr.bf16.mxu0 0
  %1160 = vmatpush1.bf16.xpose.msra.mxu0 0
  %1161 = vmatprep.subr.bf16.mxu0 0
  %1162 = vmatpush1.bf16.xpose.msra.mxu0 0
  %1163 = vmatprep.subr.bf16.mxu0 0
  %1164 = vmatpush1.bf16.xpose.msra.mxu0 0
  %1165 = vmatprep.subr.bf16.mxu0 0
  %1166 = vmatpush1.bf16.xpose.msra.mxu0 0
  %1167 = vmatprep.subr.bf16.mxu0 0
  %1168 = vmatpush1.bf16.xpose.msra.mxu0 0
  %1169 = vmatprep.subr.bf16.mxu0 0
  %1170 = vmatpush1.bf16.xpose.msra.mxu0 0
  %1171 = vmatprep.subr.bf16.mxu0 0
  %1172 = vmatpush1.bf16.xpose.msra.mxu0 0
  %1173 = vmatprep.subr.bf16.mxu0 0
  %1174 = vmatpush1.bf16.xpose.msra.mxu0 0
  %1175 = vmatprep.subr.bf16.mxu0 0
  %1176 = vmatpush1.bf16.xpose.msra.mxu0 0
  %1177 = vmatprep.subr.bf16.mxu0 0
  %1178 = vmatpush1.bf16.xpose.msra.mxu0 0
  %1179 = vmatprep.subr.bf16.mxu0 0
  %1180 = vmatpush1.bf16.xpose.msra.mxu0 0
  %1181 = vmatprep.mubr.bf16.mxu0 0
  %1182 = vmatmul.mubr.bf16.gmra.mrb[0].mxu0 %v1144
  %v1183 = vpop.f32.mrb[0].mxu0
  %v1184 = vadd.f32 %v1119, %v1183
  %v1185 = vpop.f32.mrb[0].mxu0
  %v1186 = vpop.f32.mrb[0].mxu0
  %v1187 = vadd.f32 %v1122, %v1186
  %v1188 = vpop.f32.mrb[0].mxu0
  %1189 = vmatprep.mubr.bf16.mxu0 0
  %1190 = vmatmul.mubr.bf16.gmra.mrb[0].mxu0 %v1147
  %v1191 = vpop.f32.mrb[0].mxu0
  %v1192 = vadd.f32 %v1127, %v1191
  %v1193 = vpop.f32.mrb[0].mxu0
  %v1194 = vpop.f32.mrb[0].mxu0
  %v1195 = vadd.f32 %v1130, %v1194
  %v1196 = vpop.f32.mrb[0].mxu0
  %1197 = vdwg.mxu0
  %1202 = vrot.lane.b32.xlu0 %v1184, 32
  %v1203 = vpop.permute.xlu0 %1202
  %1204 = vrot.lane.b32.xlu0 %v1187, 32
  %v1205 = vpop.permute.xlu0 %1204
  %1206 = vrot.lane.b32.xlu0 %v1192, 32
  %v1207 = vpop.permute.xlu0 %1206
  %1208 = vrot.lane.b32.xlu0 %v1195, 32
  %v1209 = vpop.permute.xlu0 %1208
  %vm1214 = vcmask 261120
  %v1215 = vsel %vm1214, %v1044, %v1203
  %v1216 = vsel %vm1214, %v1047, %v1205
  %v1217 = vsel %vm1214, %v1052, %v1207
  %v1218 = vsel %vm1214, %v1055, %v1209
  %v1219 = vsel %vm34, %v1215, 0.0
  %1220 = vadd.xlane.f32.xlu0 %v1219
  %v1221 = vpop.xlane.xlu0 %1220
  %v1222 = vsel %vm34, %v1216, 0.0
  %1223 = vadd.xlane.f32.xlu0 %v1222
  %v1224 = vpop.xlane.xlu0 %1223
  %v1225 = vsel %vm34, %v1217, 0.0
  %1226 = vadd.xlane.f32.xlu0 %v1225
  %v1227 = vpop.xlane.xlu0 %1226
  %v1228 = vsel %vm34, %v1218, 0.0
  %1229 = vadd.xlane.f32.xlu0 %v1228
  %v1230 = vpop.xlane.xlu0 %1229
  %v1231 = vmul.f32 %v1221, %v47
  %v1232 = vmul.f32 %v1224, %v47
  %v1233 = vmul.f32 %v1227, %v47
  %v1234 = vmul.f32 %v1230, %v47
  %v1235 = vsub.f32 %v1215, %v1231
  %v1236 = vsub.f32 %v1216, %v1232
  %v1237 = vsub.f32 %v1217, %v1233
  %v1238 = vsub.f32 %v1218, %v1234
  %v1239 = vmul.f32 %v1235, %v1235
  %v1240 = vmul.f32 %v1236, %v1236
  %v1241 = vmul.f32 %v1237, %v1237
  %v1242 = vmul.f32 %v1238, %v1238
  %v1243 = vsel %vm34, %v1239, 0.0
  %1244 = vadd.xlane.f32.xlu0 %v1243
  %v1245 = vpop.xlane.xlu0 %1244
  %v1246 = vsel %vm34, %v1240, 0.0
  %1247 = vadd.xlane.f32.xlu0 %v1246
  %v1248 = vpop.xlane.xlu0 %1247
  %v1249 = vsel %vm34, %v1241, 0.0
  %1250 = vadd.xlane.f32.xlu0 %v1249
  %v1251 = vpop.xlane.xlu0 %1250
  %v1252 = vsel %vm34, %v1242, 0.0
  %1253 = vadd.xlane.f32.xlu0 %v1252
  %v1254 = vpop.xlane.xlu0 %1253
  %v1255 = vmul.f32 %v1245, %v47
  %v1256 = vmul.f32 %v1248, %v47
  %v1257 = vmul.f32 %v1251, %v47
  %v1258 = vmul.f32 %v1254, %v47
  %v1259 = vadd.f32 %v1255, 1e-05
  %v1260 = vadd.f32 %v1256, 1e-05
  %v1261 = vadd.f32 %v1257, 1e-05
  %v1262 = vadd.f32 %v1258, 1e-05
  %v1263 = vrsqrt.pop %v1259
  %v1264 = vrsqrt.pop %v1260
  %v1265 = vrsqrt.pop %v1261
  %v1266 = vrsqrt.pop %v1262
  %v1267 = vmul.f32 %v1235, %v1263
  %v1268 = vmul.f32 %v1236, %v1264
  %v1269 = vmul.f32 %v1237, %v1265
  %v1270 = vmul.f32 %v1238, %v1266
  %vm1271 = vcmp.ge.f32.partialorder %v1267, 0.0
  %vm1272 = vcmp.ge.f32.partialorder %v1268, 0.0
  %vm1273 = vcmp.ge.f32.partialorder %v1269, 0.0
  %vm1274 = vcmp.ge.f32.partialorder %v1270, 0.0
  %v1275 = vmul.f32 %v1267, 0.2
  %v1276 = vmul.f32 %v1268, 0.2
  %v1277 = vmul.f32 %v1269, 0.2
  %v1278 = vmul.f32 %v1270, 0.2
  %v1279 = vsel %vm1271, %v1267, %v1275
  %v1280 = vsel %vm1272, %v1268, %v1276
  %v1281 = vsel %vm1273, %v1269, %v1277
  %v1282 = vsel %vm1274, %v1270, %v1278
  %1283 = vst.msk [vmem:[%s8] sm:$0xff] %vm34, %v1279
  %1284 = vst.msk [vmem:[%s8 + $0x8] sm:$0xff] %vm34, %v1280
  %1285 = vst.msk [vmem:[%s8 + $0x10] sm:$0xff] %vm34, %v1281
  %1286 = vst.msk [vmem:[%s8 + $0x18] sm:$0xff] %vm34, %v1282
  // Predicated region
  $region34: #{base_forward.1} parent=0 // pred_check
    _
  $region35: #{base_forward.1} parent=0 // pred_check_branch
    %1288 = sbr.rel (0) target = $region37
  $region36: #{base_forward.1} parent=0 // pred_region
    _
  $region37: #{base_forward.1} parent=0 // pred_fallthru
    _
  // Predicated region
  $region38: #{base_forward.1} parent=0 // pred_check
    _
  $region39: #{base_forward.1} parent=0 // pred_check_branch
    %1290 = sbr.rel (0) target = $region41
  $region40: #{base_forward.1} parent=0 // pred_region
    _
  $region41: #{base_forward.1} parent=0 // pred_fallthru
    _

</llo_original>
